<compile_context>
chip_gen: v7x
topology: tpu7x:2x2x1
jax: 0.10.0
libtpu: 0.0.40
codegen_flags: <defaults>
</compile_context>

<pallas_src>
import functools

import jax
import jax.numpy as jnp
from jax import lax
from jax.experimental import pallas as pl
from jax.experimental.pallas import tpu as pltpu


def _round_up(x: int, m: int) -> int:
  return ((x + m - 1) // m) * m


def _choose_tn(n: int, target: int = 512) -> int:
  """N-tile: multiple of 128 (lane-dense out), >= 2 tiles when n > 128."""
  if n <= 128:
    return 128
  half = _round_up((n + 1) // 2, 128)   # aim for at least 2 tiles (v7x 2 TCs)
  return min(target, half)


def _pad_rows(x, target_rows: int):
  pad = target_rows - x.shape[0]
  return jnp.pad(x, ((0, pad), (0, 0))) if pad else x


def _pod_deeponet_kernel(
    x_feat_ref,   # (tb, P+Q)  branch features (precomputed), basis_dtype
    x_loc_ref,    # (tn, D)    trunk inputs, f32
    pod_ref,      # (tn, P)    POD basis tile, basis_dtype
    tw1_ref,      # (D, H)     trunk layer-1 weight, f32
    tw2_ref,      # (H, Q)     trunk layer-2 weight, f32
    tbias_ref,    # (1, Hp+Qp) trunk bias slab, f32
    b_ref,        # (1,)       scalar output bias, SMEM
    out_ref,      # (tb, tn)   f32 output tile
    basis_sc,     # (tn, P+Q)  fused [pod | trunk] basis, basis_dtype
    *, D, H, P, Q, off_tb1, off_tb2,
):
  """Grid = (N-tiles "parallel", B-tiles "arbitrary").

  The fused basis (pod tile + trunk activation) depends only on the N-tile,
  so it is built once per N-tile (first B-tile) into VMEM scratch and reused
  for every B-tile.  The per-step work is a single K=(P+Q) MXU contraction.
  """
  i_b = pl.program_id(1)  # B-tile index (inner, "arbitrary")

  @pl.when(i_b == 0)
  def _build_basis():
    # POD part of the basis.
    basis_sc[:, :P] = pod_ref[...]
    # Trunk layer 1: K = D (e.g. 2) -> D broadcast-FMAs on the VPU instead of
    # a nearly-empty MXU pass.
    h = tbias_ref[:, off_tb1:off_tb1 + H]                     # (1, H)
    for d in range(D):                                        # static unroll
      h = h + x_loc_ref[:, d:d + 1] * tw1_ref[d:d + 1, :]     # (tn, H)
    h = jnp.tanh(h)
    # Trunk layer 2 on the MXU, then the outer activation_trunk.
    t = jnp.dot(h, tw2_ref[...], preferred_element_type=jnp.float32)
    t = jnp.tanh(t + tbias_ref[:, off_tb2:off_tb2 + Q])       # (tn, Q)
    basis_sc[:, P:] = t.astype(basis_sc.dtype)

  # einsum('bi,ni->bn') as one last-dim contraction against the fused basis:
  # single K = P+Q MXU pass, no concat/transpose on the per-step path.
  dn = (((1,), (1,)), ((), ()))
  acc = lax.dot_general(x_feat_ref[...], basis_sc[...], dn,
                        preferred_element_type=jnp.float32)
  out_ref[...] = (acc + b_ref[0]).astype(out_ref.dtype)


@functools.partial(jax.jit, static_argnames=("basis_dtype",))
def pod_deeponet_forward(x_func, x_loc, pod_basis, params,
                         basis_dtype=jnp.bfloat16):
  (bw1, bb1, bw2, bb2, tw1, tb1, tw2, tb2, b) = params

  B, M = x_func.shape
  N, D = x_loc.shape
  P = pod_basis.shape[1]
  H = tw1.shape[1]
  Q = tw2.shape[1]
  PQ = bw2.shape[1]
  assert PQ == P + Q, (PQ, P, Q)

  hp = lax.Precision.HIGHEST

  # ---- branch FNN hoisted to XLA: tiny (B, *) matmuls, computed once ----
  x_feat = jnp.dot(jnp.tanh(jnp.dot(x_func, bw1, precision=hp) + bb1),
                   bw2, precision=hp) + bb2                    # (B, P+Q) f32
  x_feat = x_feat.astype(basis_dtype)
  pod = pod_basis.astype(basis_dtype)

  # ---- tiling: cdiv-based grid with zero padding (sliced off at the end) ----
  tn = _choose_tn(N)
  tb = min(256, _round_up(B, 8))
  n_pad = _round_up(N, tn)
  b_pad = _round_up(B, tb)

  x_feat = _pad_rows(x_feat, b_pad)
  pod = _pad_rows(pod, n_pad)
  x_loc_p = _pad_rows(x_loc.astype(jnp.float32), n_pad)

  # Trunk biases consolidated into one 128-lane-aligned slab (single DMA).
  hp128 = _round_up(H, 128)
  qp128 = _round_up(Q, 128)
  tbias = jnp.concatenate(
      [jnp.pad(tb1, ((0, 0), (0, hp128 - H))),
       jnp.pad(tb2, ((0, 0), (0, qp128 - Q)))], axis=1)        # (1, hp128+qp128)
  off_tb1, off_tb2 = 0, hp128

  grid = (n_pad // tn, b_pad // tb)

  kernel = functools.partial(
      _pod_deeponet_kernel,
      D=D, H=H, P=P, Q=Q, off_tb1=off_tb1, off_tb2=off_tb2)

  grid_spec = pltpu.PrefetchScalarGridSpec(
      num_scalar_prefetch=0,
      grid=grid,
      in_specs=[
          pl.BlockSpec((tb, PQ), lambda j, i: (i, 0)),          # x_feat
          pl.BlockSpec((tn, D), lambda j, i: (j, 0)),           # x_loc
          pl.BlockSpec((tn, P), lambda j, i: (j, 0)),           # pod_basis
          pl.BlockSpec((D, H), lambda j, i: (0, 0)),            # tw1
          pl.BlockSpec((H, Q), lambda j, i: (0, 0)),            # tw2
          pl.BlockSpec((1, hp128 + qp128), lambda j, i: (0, 0)),  # bias slab
          pl.BlockSpec(memory_space=pltpu.MemorySpace.SMEM),    # scalar b
      ],
      out_specs=pl.BlockSpec((tb, tn), lambda j, i: (i, j)),
      scratch_shapes=[pltpu.VMEM((tn, PQ), basis_dtype)],       # fused basis
  )

  out = pl.pallas_call(
      kernel,
      out_shape=jax.ShapeDtypeStruct((b_pad, n_pad), jnp.float32),
      grid_spec=grid_spec,
      compiler_params=pltpu.CompilerParams(
          dimension_semantics=("parallel", "arbitrary"),
          vmem_limit_bytes=32 * 1024 * 1024),
  )(x_feat, x_loc_p, pod, tw1, tw2, tbias, b)

  return out[:B, :N]


def _reference_forward(x_func, x_loc, pod_basis, params,
                       basis_dtype=jnp.float32):
  """Pure-JAX reference matching the PyTorch module.

  With basis_dtype=bfloat16 it mirrors the kernel's mixed precision (bf16
  operands for the final contraction, f32 accumulation).
  """
  (bw1, bb1, bw2, bb2, tw1, tb1, tw2, tb2, b) = params
  hp = lax.Precision.HIGHEST
  xf = jnp.dot(jnp.tanh(jnp.dot(x_func, bw1, precision=hp) + bb1),
               bw2, precision=hp) + bb2
  xl = jnp.tanh(jnp.dot(jnp.tanh(jnp.dot(x_loc, tw1, precision=hp) + tb1),
                        tw2, precision=hp) + tb2)
  basis = jnp.concatenate([pod_basis, xl], axis=1)
  out = jnp.dot(xf.astype(basis_dtype), basis.astype(basis_dtype).T,
                precision=hp, preferred_element_type=jnp.float32)
  return out + b[0]


if __name__ == "__main__":
  # Small demo shapes (chosen to exercise multi-tile N, N/B padding, and the
  # lane-dense output path):
  #   B = 10   batch of input functions (pads to tb=16)
  #   M = 128  branch input (function sensor values)
  #   H = 128  hidden width (branch & trunk)
  #   P = 128  number of POD modes
  #   Q = 128  trunk output width   -> branch output width = P + Q = 256
  #   N = 320  number of output locations (pads to 512, 2 N-tiles of 256)
  #   D = 2    trunk input (coordinate) dimension
  B, M, H, P, Q, N, D = 10, 128, 128, 128, 128, 320, 2

  key = jax.random.PRNGKey(0)
  keys = jax.random.split(key, 8)

  def glorot(k, fan_in, fan_out):
    scale = jnp.sqrt(2.0 / (fan_in + fan_out))
    return (scale * jax.random.normal(k, (fan_in, fan_out))).astype(jnp.float32)

  # Inputs
  x_func = jax.random.normal(keys[0], (B, M), dtype=jnp.float32)
  x_loc = jax.random.normal(keys[1], (N, D), dtype=jnp.float32)
  pod_basis = jax.random.normal(keys[2], (N, P), dtype=jnp.float32)

  # Branch FNN: layer_sizes_branch = [M, H, P + Q]
  bw1 = glorot(keys[3], M, H)
  bb1 = jnp.zeros((1, H), dtype=jnp.float32)
  bw2 = glorot(keys[4], H, P + Q)
  bb2 = jnp.zeros((1, P + Q), dtype=jnp.float32)

  # Trunk FNN: layer_sizes_trunk = [D, H, Q]
  tw1 = glorot(keys[5], D, H)
  tb1 = jnp.zeros((1, H), dtype=jnp.float32)
  tw2 = glorot(keys[6], H, Q)
  tb2 = jnp.zeros((1, Q), dtype=jnp.float32)

  # self.b = Parameter(0.0)  (scalar output bias, lives in SMEM)
  b = jnp.zeros((1,), dtype=jnp.float32)

  params = (bw1, bb1, bw2, bb2, tw1, tb1, tw2, tb2, b)

  # --- bf16 basis streaming (production default) vs mixed-precision ref ---
  out_bf16 = jax.block_until_ready(
      pod_deeponet_forward(x_func, x_loc, pod_basis, params,
                           basis_dtype=jnp.bfloat16))
  ref_bf16 = _reference_forward(x_func, x_loc, pod_basis, params,
                                basis_dtype=jnp.bfloat16)
  assert out_bf16.shape == (B, N), out_bf16.shape
  assert jnp.allclose(out_bf16, ref_bf16, atol=3e-2, rtol=2e-2), float(
      jnp.max(jnp.abs(out_bf16 - ref_bf16)))

  # --- full f32 path vs f32 reference (tight tolerance) ---
  out_f32 = jax.block_until_ready(
      pod_deeponet_forward(x_func, x_loc, pod_basis, params,
                           basis_dtype=jnp.float32))
  ref_f32 = _reference_forward(x_func, x_loc, pod_basis, params,
                               basis_dtype=jnp.float32)
  assert out_f32.shape == (B, N), out_f32.shape
  assert jnp.allclose(out_f32, ref_f32, atol=1e-3, rtol=1e-3), float(
      jnp.max(jnp.abs(out_f32 - ref_f32)))

  # TODO(synk): the `trunk is None` (pure-POD) configuration of PODDeepONet is
  # not exercised here; it is this kernel minus the trunk/scratch-fill branch.
  print("KERNEL_OK")
</pallas_src>

<mosaic_0001>
module attributes {stable_mosaic.version = 11 : i64} {
  func.func @_pod_deeponet_kernel(%arg0: i32, %arg1: i32, %arg2: memref<16x256xbf16, #tpu.memory_space<vmem>>, %arg3: memref<256x2xf32, #tpu.memory_space<vmem>>, %arg4: memref<256x128xbf16, #tpu.memory_space<vmem>>, %arg5: memref<2x128xf32, #tpu.memory_space<vmem>>, %arg6: memref<128x128xf32, #tpu.memory_space<vmem>>, %arg7: memref<1x256xf32, #tpu.memory_space<vmem>>, %arg8: memref<1xf32, #tpu.memory_space<smem>>, %arg9: memref<16x256xf32, #tpu.memory_space<vmem>>, %arg10: memref<256x256xbf16, #tpu.memory_space<vmem>>) attributes {dimension_semantics = [#tpu.dimension_semantics<parallel>, #tpu.dimension_semantics<arbitrary>], iteration_bounds = array<i64: 2, 1>, scalar_prefetch = 0 : i64, scratch_operands = 1 : i64, tpu.core_type = #tpu.core_type<tc>, window_params = [{transform_indices = @transform_0, window_bounds = array<i64: 16, 256>}, {transform_indices = @transform_1, window_bounds = array<i64: 256, 2>}, {transform_indices = @transform_2, window_bounds = array<i64: 256, 128>}, {pipeline_mode = #tpu.pipeline_mode<synchronous>, transform_indices = @transform_3, window_bounds = array<i64: 2, 128>}, {pipeline_mode = #tpu.pipeline_mode<synchronous>, transform_indices = @transform_4, window_bounds = array<i64: 128, 128>}, {pipeline_mode = #tpu.pipeline_mode<synchronous>, transform_indices = @transform_5, window_bounds = array<i64: 1, 256>}, {transform_indices = @transform_6, window_bounds = array<i64: 1>}, {transform_indices = @transform_7, window_bounds = array<i64: 16, 256>}]} {
    %c0_i32 = arith.constant 0 : i32
    %0 = arith.cmpi eq, %arg1, %c0_i32 : i32
    %1 = arith.extui %0 : i1 to i32
    %c0_i32_0 = arith.constant 0 : i32
    %2 = arith.cmpi ne, %1, %c0_i32_0 : i32
    scf.if %2 {
      %c0_7 = arith.constant 0 : index
      %c0_8 = arith.constant 0 : index
      %10 = vector.load %arg4[%c0_7, %c0_8] : memref<256x128xbf16, #tpu.memory_space<vmem>>, vector<256x128xbf16>
      %c0_9 = arith.constant 0 : index
      %c0_10 = arith.constant 0 : index
      %11 = vector.load %arg10[%c0_9, %c0_10] : memref<256x256xbf16, #tpu.memory_space<vmem>>, vector<256x128xbf16>
      tpu.vector_store %arg10[%c0_9, %c0_10], %10 {strides = array<i32>} : memref<256x256xbf16, #tpu.memory_space<vmem>>, vector<256x128xbf16>,
      %c0_11 = arith.constant 0 : index
      %c0_12 = arith.constant 0 : index
      %12 = vector.load %arg7[%c0_11, %c0_12] : memref<1x256xf32, #tpu.memory_space<vmem>>, vector<1x128xf32>
      %c0_13 = arith.constant 0 : index
      %c0_14 = arith.constant 0 : index
      %13 = vector.load %arg3[%c0_13, %c0_14] : memref<256x2xf32, #tpu.memory_space<vmem>>, vector<256x1xf32>
      %c0_15 = arith.constant 0 : index
      %c0_16 = arith.constant 0 : index
      %14 = vector.load %arg5[%c0_15, %c0_16] : memref<2x128xf32, #tpu.memory_space<vmem>>, vector<1x128xf32>
      %15 = vector.broadcast %13 : vector<256x1xf32> to vector<256x128xf32>
      %16 = vector.broadcast %14 : vector<1x128xf32> to vector<256x128xf32>
      %17 = arith.mulf %15, %16 : vector<256x128xf32>
      %18 = vector.broadcast %12 : vector<1x128xf32> to vector<256x128xf32>
      %19 = arith.addf %18, %17 : vector<256x128xf32>
      %c0_17 = arith.constant 0 : index
      %c1 = arith.constant 1 : index
      %20 = vector.load %arg3[%c0_17, %c1] : memref<256x2xf32, #tpu.memory_space<vmem>>, vector<256x1xf32>
      %c1_18 = arith.constant 1 : index
      %c0_19 = arith.constant 0 : index
      %21 = vector.load %arg5[%c1_18, %c0_19] : memref<2x128xf32, #tpu.memory_space<vmem>>, vector<1x128xf32>
      %22 = vector.broadcast %20 : vector<256x1xf32> to vector<256x128xf32>
      %23 = vector.broadcast %21 : vector<1x128xf32> to vector<256x128xf32>
      %24 = arith.mulf %22, %23 : vector<256x128xf32>
      %25 = arith.addf %19, %24 : vector<256x128xf32>
      %26 = math.tanh %25 : vector<256x128xf32>
      %c0_20 = arith.constant 0 : index
      %c0_21 = arith.constant 0 : index
      %27 = vector.load %arg6[%c0_20, %c0_21] : memref<128x128xf32, #tpu.memory_space<vmem>>, vector<128x128xf32>
      %cst_22 = arith.constant dense<0.000000e+00> : vector<256x128xf32>
      %28 = tpu.matmul %26, %27, %cst_22 {dimension_numbers = #tpu.dot_dimension_numbers<[1], [0], [0], [1], [0, 0, 1, 1], [], []>} : vector<256x128xf32>, vector<128x128xf32>, vector<256x128xf32> -> vector<256x128xf32>
      %c0_23 = arith.constant 0 : index
      %c128 = arith.constant 128 : index
      %29 = vector.load %arg7[%c0_23, %c128] : memref<1x256xf32, #tpu.memory_space<vmem>>, vector<1x128xf32>
      %30 = vector.broadcast %29 : vector<1x128xf32> to vector<256x128xf32>
      %31 = arith.addf %28, %30 : vector<256x128xf32>
      %32 = math.tanh %31 : vector<256x128xf32>
      %33 = arith.truncf %32 : vector<256x128xf32> to vector<256x128xbf16>
      %c0_24 = arith.constant 0 : index
      %c128_25 = arith.constant 128 : index
      %34 = vector.load %arg10[%c0_24, %c128_25] : memref<256x256xbf16, #tpu.memory_space<vmem>>, vector<256x128xbf16>
      tpu.vector_store %arg10[%c0_24, %c128_25], %33 {strides = array<i32>} : memref<256x256xbf16, #tpu.memory_space<vmem>>, vector<256x128xbf16>,
    } else {
    }
    %c0 = arith.constant 0 : index
    %c0_1 = arith.constant 0 : index
    %3 = vector.load %arg2[%c0, %c0_1] : memref<16x256xbf16, #tpu.memory_space<vmem>>, vector<16x256xbf16>
    %c0_2 = arith.constant 0 : index
    %c0_3 = arith.constant 0 : index
    %4 = vector.load %arg10[%c0_2, %c0_3] : memref<256x256xbf16, #tpu.memory_space<vmem>>, vector<256x256xbf16>
    %cst = arith.constant dense<0.000000e+00> : vector<16x256xf32>
    %5 = tpu.matmul %3, %4, %cst {dimension_numbers = #tpu.dot_dimension_numbers<[1], [1], [0], [0], [0, 0, 1, 0], [], []>} : vector<16x256xbf16>, vector<256x256xbf16>, vector<16x256xf32> -> vector<16x256xf32>
    %c0_4 = arith.constant 0 : index
    %6 = memref.load %arg8[%c0_4] : memref<1xf32, #tpu.memory_space<smem>>
    %7 = vector.broadcast %6 : f32 to vector<16x256xf32>
    %8 = arith.addf %5, %7 : vector<16x256xf32>
    %c0_5 = arith.constant 0 : index
    %c0_6 = arith.constant 0 : index
    %9 = vector.load %arg9[%c0_5, %c0_6] : memref<16x256xf32, #tpu.memory_space<vmem>>, vector<16x256xf32>
    tpu.vector_store %arg9[%c0_5, %c0_6], %8 {strides = array<i32>} : memref<16x256xf32, #tpu.memory_space<vmem>>, vector<16x256xf32>,
    return
  }
  func.func @transform_0(%arg0: i32, %arg1: i32) -> (i32, i32) {
    %c0_i32 = arith.constant 0 : i32
    %c0_i32_0 = arith.constant 0 : i32
    return %arg1, %c0_i32 : i32, i32
  }
  func.func @transform_1(%arg0: i32, %arg1: i32) -> (i32, i32) {
    %c0_i32 = arith.constant 0 : i32
    %c0_i32_0 = arith.constant 0 : i32
    return %arg0, %c0_i32 : i32, i32
  }
  func.func @transform_2(%arg0: i32, %arg1: i32) -> (i32, i32) {
    %c0_i32 = arith.constant 0 : i32
    %c0_i32_0 = arith.constant 0 : i32
    return %arg0, %c0_i32 : i32, i32
  }
  func.func @transform_3(%arg0: i32, %arg1: i32) -> (i32, i32) {
    %c0_i32 = arith.constant 0 : i32
    %c0_i32_0 = arith.constant 0 : i32
    %c0_i32_1 = arith.constant 0 : i32
    return %c0_i32, %c0_i32_0 : i32, i32
  }
  func.func @transform_4(%arg0: i32, %arg1: i32) -> (i32, i32) {
    %c0_i32 = arith.constant 0 : i32
    %c0_i32_0 = arith.constant 0 : i32
    %c0_i32_1 = arith.constant 0 : i32
    return %c0_i32, %c0_i32_0 : i32, i32
  }
  func.func @transform_5(%arg0: i32, %arg1: i32) -> (i32, i32) {
    %c0_i32 = arith.constant 0 : i32
    %c0_i32_0 = arith.constant 0 : i32
    %c0_i32_1 = arith.constant 0 : i32
    return %c0_i32, %c0_i32_0 : i32, i32
  }
  func.func @transform_6(%arg0: i32, %arg1: i32) -> i32 {
    %c0_i32 = arith.constant 0 : i32
    %c0_i32_0 = arith.constant 0 : i32
    return %c0_i32 : i32
  }
  func.func @transform_7(%arg0: i32, %arg1: i32) -> (i32, i32) {
    %c0_i32 = arith.constant 0 : i32
    return %arg1, %arg0 : i32, i32
  }
}

</mosaic_0001>

<llo_original>
// kernel: pod_deeponet_forward.1
$region0: #{pod_deeponet_forward.1}
  #allocation0 [shape = 'u32[]', space=smem, size = 0x4, offset = 0x4, fixed_abs, tag = 'smem constant byte address 0x4 - core index']
  #allocation1 [shape = 'u32[144,128]{1,0:T(1,128)}', space=vmem, size = 0x12000, scoped, tag = 'internal scratch']
  #allocation2 [shape = 'bf16[256,256]{1,0:T(16,128)(2,1)}', space=vmem, size = 0x20000, scoped, tag = 'scratch operand']
  #allocation3 [shape = 'f32[1]{0:T(128)S(6)}', space=smem, size = 0x200, scoped, tag = 'scoped memory for pod_deeponet_forward.1']
  %s0 = inlined_call_operand.vmem [shape: bf16[16,256], index: 0, kind: input, shape index: {}]
  %s1 = inlined_call_operand.vmem [shape: f32[512,2], index: 1, kind: input, shape index: {}]
  %s2 = inlined_call_operand.vmem [shape: bf16[512,128], index: 2, kind: input, shape index: {}]
  %s3 = inlined_call_operand.vmem [shape: f32[2,128], index: 3, kind: input, shape index: {}]
  %s4 = inlined_call_operand.vmem [shape: f32[128,128], index: 4, kind: input, shape index: {}]
  %s5 = inlined_call_operand.vmem [shape: f32[1,256], index: 5, kind: input, shape index: {}]
  %s6 = inlined_call_operand.<no memory space> [shape: f32[1], index: 6, kind: input, shape index: {}]
  %s7 = inlined_call_operand.vmem [shape: f32[16,512], index: 7, kind: output, shape index: {}]
  %s8 = sld [smem:[#allocation0]]
  $region84: #{pod_deeponet_forward.1} parent=0
    _
  %s10 = ssub.s32 1, %s8
  %s11 = scalar_select 0, %s10, %s8
  %12 = sst [smem:[#allocation3]] %s6
  $region1: #{pod_deeponet_forward.1} parent=0
    #allocation4 [shape = 'u8[32768]{0}', space=vmem, size = 0x8000, scoped, tag = 'output window, operand 0']
    loop: start=0, step=1, limit=4
    $region2: #{pod_deeponet_forward.1} parent=1 // loop_pre_header
      _
    $region3: #{pod_deeponet_forward.1} parent=1 // loop_header
      %s14 = sphi 0, %s18
      %p15 = scmp.ge.s32.totalorder %s14, 4
      %s21 = sphi 0, %s33
      %s22 = sphi 0, %s29
      %s23 = sphi 0, %s21
      %s24 = sphi 0, %s22
      %s25 = sphi 0, %s23
      %s26 = sphi 0, %s24
      %s36 = sphi 0, %s38
      %s39 = sphi 0, %s36
      %s40 = sphi 0, %s39
      %s56 = sphi 0, %s40
      %s62 = sphi 0, %s64
      %s65 = sphi 0, %s62
      %s66 = sphi 0, %s65
      %s82 = sphi 0, %s66
      %s88 = sphi 0, %s90
      %s91 = sphi 0, %s88
      %s92 = sphi 0, %s91
      %s108 = sphi 0, %s92
      %s112 = sphi 0, %s112
      %s114 = sphi 0, %s112
      %s115 = sphi 0, %s114
      %s129 = sphi 0, %s115
      %s133 = sphi 0, %s133
      %s135 = sphi 0, %s133
      %s136 = sphi 0, %s135
      %s150 = sphi 0, %s136
      %s154 = sphi 0, %s154
      %s156 = sphi 0, %s154
      %s157 = sphi 0, %s156
      %s171 = sphi 0, %s157
      %s175 = sphi 0, %s175
      %s177 = sphi 0, %s175
      %s178 = sphi 0, %s177
      %s192 = sphi 0, %s178
      %s200 = sphi 0, %s202
      %s203 = sphi 0, %s200
      %s204 = sphi 0, %s203
      %s220 = sphi 0, %s204
    $region4: #{pod_deeponet_forward.1} parent=1 // loop_header_branch
      %17 = sbr.rel (%p15) target = $region8
    $region5: #{pod_deeponet_forward.1} parent=1 // loop_body
      %s19 = ssub.s32 %s14, 1
      %s20 = ssub.s32 %s14, 2
      %s27 = sadd.s32 1, %s22
      %p28 = scmp.ge.s32.totalorder %s27, 1
      %s29 = scalar_select %p28, 0, %s27
      %s30 = sadd.s32 1, %s21
      %s31 = scalar_select %p28, %s30, %s21
      %p32 = scmp.ge.s32.totalorder %s31, 2
      %s33 = scalar_select %p32, 0, %s31
      %s34 = ssub.s32 %s22, %s29
      %p35 = scmp.eq.s32.totalorder %s34, 0
      %s37 = sadd.s32 %s36, 1
      %s38 = scalar_select %p35, %s36, %s37
      %p41 = pneg %p35
      %p42 = scmp.eq.s32.totalorder %s14, 1
      %p43 = por %p41, %p42
      %p44 = scmp.ne.s32.totalorder %s36, %s39
      %p45 = scmp.eq.s32.totalorder %s14, 0
      %p46 = por %p44, %p45
      %p47 = scmp.ne.s32.totalorder %s36, %s39
      %p48 = scmp.eq.s32.totalorder %s19, 1
      %p49 = por %p47, %p48
      %p50 = scmp.ne.s32.totalorder %s39, %s40
      %p51 = scmp.eq.s32.totalorder %s19, 0
      %p52 = por %p50, %p51
      %p53 = scmp.ne.s32.totalorder %s39, %s40
      %p54 = scmp.eq.s32.totalorder %s20, 1
      %p55 = por %p53, %p54
      %p57 = scmp.ne.s32.totalorder %s40, %s56
      %p58 = scmp.eq.s32.totalorder %s20, 0
      %p59 = por %p57, %p58
      %s60 = ssub.s32 %s21, %s33
      %p61 = scmp.eq.s32.totalorder %s60, 0
      %s63 = sadd.s32 %s62, 1
      %s64 = scalar_select %p61, %s62, %s63
      %p67 = pneg %p61
      %p68 = scmp.eq.s32.totalorder %s14, 1
      %p69 = por %p67, %p68
      %p70 = scmp.ne.s32.totalorder %s62, %s65
      %p71 = scmp.eq.s32.totalorder %s14, 0
      %p72 = por %p70, %p71
      %p73 = scmp.ne.s32.totalorder %s62, %s65
      %p74 = scmp.eq.s32.totalorder %s19, 1
      %p75 = por %p73, %p74
      %p76 = scmp.ne.s32.totalorder %s65, %s66
      %p77 = scmp.eq.s32.totalorder %s19, 0
      %p78 = por %p76, %p77
      %p79 = scmp.ne.s32.totalorder %s65, %s66
      %p80 = scmp.eq.s32.totalorder %s20, 1
      %p81 = por %p79, %p80
      %p83 = scmp.ne.s32.totalorder %s66, %s82
      %p84 = scmp.eq.s32.totalorder %s20, 0
      %p85 = por %p83, %p84
      %s86 = ssub.s32 %s21, %s33
      %p87 = scmp.eq.s32.totalorder %s86, 0
      %s89 = sadd.s32 %s88, 1
      %s90 = scalar_select %p87, %s88, %s89
      %p93 = pneg %p87
      %p94 = scmp.eq.s32.totalorder %s14, 1
      %p95 = por %p93, %p94
      %p96 = scmp.ne.s32.totalorder %s88, %s91
      %p97 = scmp.eq.s32.totalorder %s14, 0
      %p98 = por %p96, %p97
      %p99 = scmp.ne.s32.totalorder %s88, %s91
      %p100 = scmp.eq.s32.totalorder %s19, 1
      %p101 = por %p99, %p100
      %p102 = scmp.ne.s32.totalorder %s91, %s92
      %p103 = scmp.eq.s32.totalorder %s19, 0
      %p104 = por %p102, %p103
      %p105 = scmp.ne.s32.totalorder %s91, %s92
      %p106 = scmp.eq.s32.totalorder %s20, 1
      %p107 = por %p105, %p106
      %p109 = scmp.ne.s32.totalorder %s92, %s108
      %p110 = scmp.eq.s32.totalorder %s20, 0
      %p111 = por %p109, %p110
      %s113 = sadd.s32 %s112, 1
      %p116 = scmp.eq.s32.totalorder %s14, 1
      %p117 = scmp.ne.s32.totalorder %s112, %s114
      %p118 = scmp.eq.s32.totalorder %s14, 0
      %p119 = por %p117, %p118
      %p120 = scmp.ne.s32.totalorder %s112, %s114
      %p121 = scmp.eq.s32.totalorder %s19, 1
      %p122 = por %p120, %p121
      %p123 = scmp.ne.s32.totalorder %s114, %s115
      %p124 = scmp.eq.s32.totalorder %s19, 0
      %p125 = por %p123, %p124
      %p126 = scmp.ne.s32.totalorder %s114, %s115
      %p127 = scmp.eq.s32.totalorder %s20, 1
      %p128 = por %p126, %p127
      %p130 = scmp.ne.s32.totalorder %s115, %s129
      %p131 = scmp.eq.s32.totalorder %s20, 0
      %p132 = por %p130, %p131
      %s134 = sadd.s32 %s133, 1
      %p137 = scmp.eq.s32.totalorder %s14, 1
      %p138 = scmp.ne.s32.totalorder %s133, %s135
      %p139 = scmp.eq.s32.totalorder %s14, 0
      %p140 = por %p138, %p139
      %p141 = scmp.ne.s32.totalorder %s133, %s135
      %p142 = scmp.eq.s32.totalorder %s19, 1
      %p143 = por %p141, %p142
      %p144 = scmp.ne.s32.totalorder %s135, %s136
      %p145 = scmp.eq.s32.totalorder %s19, 0
      %p146 = por %p144, %p145
      %p147 = scmp.ne.s32.totalorder %s135, %s136
      %p148 = scmp.eq.s32.totalorder %s20, 1
      %p149 = por %p147, %p148
      %p151 = scmp.ne.s32.totalorder %s136, %s150
      %p152 = scmp.eq.s32.totalorder %s20, 0
      %p153 = por %p151, %p152
      %s155 = sadd.s32 %s154, 1
      %p158 = scmp.eq.s32.totalorder %s14, 1
      %p159 = scmp.ne.s32.totalorder %s154, %s156
      %p160 = scmp.eq.s32.totalorder %s14, 0
      %p161 = por %p159, %p160
      %p162 = scmp.ne.s32.totalorder %s154, %s156
      %p163 = scmp.eq.s32.totalorder %s19, 1
      %p164 = por %p162, %p163
      %p165 = scmp.ne.s32.totalorder %s156, %s157
      %p166 = scmp.eq.s32.totalorder %s19, 0
      %p167 = por %p165, %p166
      %p168 = scmp.ne.s32.totalorder %s156, %s157
      %p169 = scmp.eq.s32.totalorder %s20, 1
      %p170 = por %p168, %p169
      %p172 = scmp.ne.s32.totalorder %s157, %s171
      %p173 = scmp.eq.s32.totalorder %s20, 0
      %p174 = por %p172, %p173
      %s176 = sadd.s32 %s175, 1
      %p179 = scmp.eq.s32.totalorder %s14, 1
      %p180 = scmp.ne.s32.totalorder %s175, %s177
      %p181 = scmp.eq.s32.totalorder %s14, 0
      %p182 = por %p180, %p181
      %p183 = scmp.ne.s32.totalorder %s175, %s177
      %p184 = scmp.eq.s32.totalorder %s19, 1
      %p185 = por %p183, %p184
      %p186 = scmp.ne.s32.totalorder %s177, %s178
      %p187 = scmp.eq.s32.totalorder %s19, 0
      %p188 = por %p186, %p187
      %p189 = scmp.ne.s32.totalorder %s177, %s178
      %p190 = scmp.eq.s32.totalorder %s20, 1
      %p191 = por %p189, %p190
      %p193 = scmp.ne.s32.totalorder %s178, %s192
      %p194 = scmp.eq.s32.totalorder %s20, 0
      %p195 = por %p193, %p194
      %s196 = ssub.s32 %s22, %s29
      %s197 = ssub.s32 %s21, %s33
      %s198 = sor.u32 %s196, %s197
      %p199 = scmp.eq.s32.totalorder %s198, 0
      %s201 = sadd.s32 %s200, 1
      %s202 = scalar_select %p199, %s200, %s201
      %p205 = pneg %p199
      %p206 = scmp.eq.s32.totalorder %s14, 1
      %p207 = por %p205, %p206
      %p208 = scmp.ne.s32.totalorder %s200, %s203
      %p209 = scmp.eq.s32.totalorder %s14, 0
      %p210 = por %p208, %p209
      %p211 = scmp.ne.s32.totalorder %s200, %s203
      %p212 = scmp.eq.s32.totalorder %s19, 1
      %p213 = por %p211, %p212
      %p214 = scmp.ne.s32.totalorder %s203, %s204
      %p215 = scmp.eq.s32.totalorder %s19, 0
      %p216 = por %p214, %p215
      %p217 = scmp.ne.s32.totalorder %s203, %s204
      %p218 = scmp.eq.s32.totalorder %s20, 1
      %p219 = por %p217, %p218
      %p221 = scmp.ne.s32.totalorder %s204, %s220
      %p222 = scmp.eq.s32.totalorder %s20, 0
      %p223 = por %p221, %p222
      %p224 = scmp.le.s32.totalorder 1, %s14
      %p225 = scmp.lt.s32.totalorder %s14, 3
      %p226 = pnand %p224, %p225
      %p227 = pneg %p226
      // Predicated region
      $region9: #{pod_deeponet_forward.1} parent=5 // pred_check
        _
      $region10: #{pod_deeponet_forward.1} parent=5 // pred_check_branch
        %229 = sbr.rel (%p226) target = $region12
      $region11: #{pod_deeponet_forward.1} parent=5 // pred_region
        %s230 = ssub.s32 %s14, 1
        // Predicated region
        $region13: #{pod_deeponet_forward.1} parent=11 // pred_check
          %p231 = pneg %p52
        $region14: #{pod_deeponet_forward.1} parent=11 // pred_check_branch
          %233 = sbr.rel (%p231) target = $region16
        $region15: #{pod_deeponet_forward.1} parent=11 // pred_region
          %s234 = smul.u32 2, %s24
          %p235 = scmp.lt.s32.totalorder %s234, 1
          %s236 = scalar_select %p235, %s234, 1
          %s237 = smul.addr %s236, 2
          %s238 = smul.addr %s237, 4
          %s239 = scalar_lea.vmem %s0, %s238
          %s240 = smul.u32 2, %s24
        $region16: #{pod_deeponet_forward.1} parent=11 // pred_fallthru
          _
        // Predicated region
        $region17: #{pod_deeponet_forward.1} parent=11 // pred_check
          %p241 = pneg %p125
        $region18: #{pod_deeponet_forward.1} parent=11 // pred_check_branch
          %243 = sbr.rel (%p241) target = $region20
        $region19: #{pod_deeponet_forward.1} parent=11 // pred_region
          _
        $region20: #{pod_deeponet_forward.1} parent=11 // pred_fallthru
          _
        // Predicated region
        $region21: #{pod_deeponet_forward.1} parent=11 // pred_check
          %p244 = pneg %p146
        $region22: #{pod_deeponet_forward.1} parent=11 // pred_check_branch
          %246 = sbr.rel (%p244) target = $region24
        $region23: #{pod_deeponet_forward.1} parent=11 // pred_region
          _
        $region24: #{pod_deeponet_forward.1} parent=11 // pred_fallthru
          _
        // Predicated region
        $region25: #{pod_deeponet_forward.1} parent=11 // pred_check
          %p247 = pneg %p167
        $region26: #{pod_deeponet_forward.1} parent=11 // pred_check_branch
          %249 = sbr.rel (%p247) target = $region28
        $region27: #{pod_deeponet_forward.1} parent=11 // pred_region
          _
        $region28: #{pod_deeponet_forward.1} parent=11 // pred_fallthru
          _
        // Predicated region
        $region29: #{pod_deeponet_forward.1} parent=11 // pred_check
          %p250 = pneg %p188
        $region30: #{pod_deeponet_forward.1} parent=11 // pred_check_branch
          %252 = sbr.rel (%p250) target = $region32
        $region31: #{pod_deeponet_forward.1} parent=11 // pred_region
          _
        $region32: #{pod_deeponet_forward.1} parent=11 // pred_fallthru
          _
      $region12: #{pod_deeponet_forward.1} parent=5 // pred_fallthru
        _
      %p253 = scmp.lt.s32.totalorder %s14, 2
      // Predicated region
      $region33: #{pod_deeponet_forward.1} parent=5 // pred_check
        %p254 = pneg %p253
      $region34: #{pod_deeponet_forward.1} parent=5 // pred_check_branch
        %256 = sbr.rel (%p254) target = $region36
      $region35: #{pod_deeponet_forward.1} parent=5 // pred_region
        // Predicated region
        $region37: #{pod_deeponet_forward.1} parent=35 // pred_check
          %p257 = pneg %p72
        $region38: #{pod_deeponet_forward.1} parent=35 // pred_check_branch
          %259 = sbr.rel (%p257) target = $region40
        $region39: #{pod_deeponet_forward.1} parent=35 // pred_region
          %s260 = smul.u32 32, %s21
          %p261 = scmp.lt.s32.totalorder %s260, 63
          %s262 = scalar_select %p261, %s260, 63
          %s263 = smul.addr %s262, 8
          %s264 = scalar_lea.vmem %s1, %s263
          %s265 = smul.u32 32, %s21
        $region40: #{pod_deeponet_forward.1} parent=35 // pred_fallthru
          _
        // Predicated region
        $region41: #{pod_deeponet_forward.1} parent=35 // pred_check
          %p266 = pneg %p98
        $region42: #{pod_deeponet_forward.1} parent=35 // pred_check_branch
          %268 = sbr.rel (%p266) target = $region44
        $region43: #{pod_deeponet_forward.1} parent=35 // pred_region
          %s269 = smul.u32 32, %s21
          %p270 = scmp.lt.s32.totalorder %s269, 63
          %s271 = scalar_select %p270, %s269, 63
          %s272 = smul.addr %s271, 4
          %s273 = scalar_lea.vmem %s2, %s272
          %s274 = smul.u32 32, %s21
        $region44: #{pod_deeponet_forward.1} parent=35 // pred_fallthru
          _
      $region36: #{pod_deeponet_forward.1} parent=5 // pred_fallthru
        _
      %p275 = scmp.le.s32.totalorder 1, %s14
      %p276 = scmp.lt.s32.totalorder %s14, 3
      %p277 = pnand %p275, %p276
      %p278 = pneg %p277
      // Predicated region
      $region45: #{pod_deeponet_forward.1} parent=5 // pred_check
        _
      $region46: #{pod_deeponet_forward.1} parent=5 // pred_check_branch
        %280 = sbr.rel (%p277) target = $region48
      $region47: #{pod_deeponet_forward.1} parent=5 // pred_region
        %s281 = ssub.s32 %s14, 1
        %s282 = smul.u32 2, %s24
        %p283 = scmp.lt.s32.totalorder %s282, 1
        %s284 = scalar_select %p283, %s282, 1
        %s285 = smul.addr %s284, 2
        %s286 = smul.addr %s285, 4
        %s287 = scalar_lea.vmem %s0, %s286
        %p288 = pneg %p52
        %p289 = pneg %p49
        %s290 = smul.u32 32, %s23
        %p291 = scmp.lt.s32.totalorder %s290, 63
        %s292 = scalar_select %p291, %s290, 63
        %s293 = smul.addr %s292, 8
        %s294 = scalar_lea.vmem %s1, %s293
        %p295 = pneg %p78
        %p296 = pneg %p75
        %s297 = smul.u32 32, %s23
        %p298 = scmp.lt.s32.totalorder %s297, 63
        %s299 = scalar_select %p298, %s297, 63
        %s300 = smul.addr %s299, 4
        %s301 = scalar_lea.vmem %s2, %s300
        %p302 = pneg %p104
        %p303 = pneg %p101
        %p304 = pneg %p125
        %p305 = pneg %p122
        %p306 = pneg %p146
        %p307 = pneg %p143
        %p308 = pneg %p167
        %p309 = pneg %p164
        %p310 = pneg %p188
        %p311 = pneg %p185
        %p312 = pneg %p216
        %p313 = pneg %p213
        %s314 = sand.u32 %s203, 1
        %s315 = sand.u32 %s203, 1
        %s316 = smul.addr %s315, 32
        %s317 = scalar_lea.vmem [#allocation4], %s316
        %s318 = smul.u32 2, %s24
        %p319 = scmp.lt.s32.totalorder %s318, 1
        %s320 = scalar_select %p319, %s318, 1
        %s321 = smul.addr %s320, 2
        %s322 = smul.addr %s321, 4
        %s323 = scalar_lea.vmem %s0, %s322
        %s324 = smul.u32 2, %s24
        %s325 = smul.u32 32, %s23
        %p326 = scmp.lt.s32.totalorder %s325, 63
        %s327 = scalar_select %p326, %s325, 63
        %s328 = smul.addr %s327, 8
        %s329 = scalar_lea.vmem %s1, %s328
        %s330 = smul.u32 32, %s23
        %s331 = smul.u32 32, %s23
        %p332 = scmp.lt.s32.totalorder %s331, 63
        %s333 = scalar_select %p332, %s331, 63
        %s334 = smul.addr %s333, 4
        %s335 = scalar_lea.vmem %s2, %s334
        %s336 = smul.u32 32, %s23
        %s337 = smul.u32 2, %s24
        %s338 = smul.u32 2, %s23
        %p339 = scmp.eq.s32.totalorder %s24, 0
        // Predicated region
        $region49: #{pod_deeponet_forward.1} parent=47 // pred_check
          %p340 = pneg %p339
        $region50: #{pod_deeponet_forward.1} parent=47 // pred_check_branch
          %342 = sbr.rel (%p340) target = $region52
        $region51: #{pod_deeponet_forward.1} parent=47 // pred_region
          %v343 = vld [vmem:[%s335] sm:$0xf]
          %v344 = vld [vmem:[%s335 + $0x4] sm:$0xf]
          %v345 = vld [vmem:[%s335 + $0x8] sm:$0xf]
          %v346 = vld [vmem:[%s335 + $0xc] sm:$0xf]
          %v347 = vld [vmem:[%s335 + $0x10] sm:$0xf]
          %v348 = vld [vmem:[%s335 + $0x14] sm:$0xf]
          %v349 = vld [vmem:[%s335 + $0x18] sm:$0xf]
          %v350 = vld [vmem:[%s335 + $0x1c] sm:$0xf]
          %v351 = vld [vmem:[%s335 + $0x20] sm:$0xf]
          %v352 = vld [vmem:[%s335 + $0x24] sm:$0xf]
          %v353 = vld [vmem:[%s335 + $0x28] sm:$0xf]
          %v354 = vld [vmem:[%s335 + $0x2c] sm:$0xf]
          %v355 = vld [vmem:[%s335 + $0x30] sm:$0xf]
          %v356 = vld [vmem:[%s335 + $0x34] sm:$0xf]
          %v357 = vld [vmem:[%s335 + $0x38] sm:$0xf]
          %v358 = vld [vmem:[%s335 + $0x3c] sm:$0xf]
          %v359 = vld [vmem:[%s335 + $0x40] sm:$0xf]
          %v360 = vld [vmem:[%s335 + $0x44] sm:$0xf]
          %v361 = vld [vmem:[%s335 + $0x48] sm:$0xf]
          %v362 = vld [vmem:[%s335 + $0x4c] sm:$0xf]
          %v363 = vld [vmem:[%s335 + $0x50] sm:$0xf]
          %v364 = vld [vmem:[%s335 + $0x54] sm:$0xf]
          %v365 = vld [vmem:[%s335 + $0x58] sm:$0xf]
          %v366 = vld [vmem:[%s335 + $0x5c] sm:$0xf]
          %v367 = vld [vmem:[%s335 + $0x60] sm:$0xf]
          %v368 = vld [vmem:[%s335 + $0x64] sm:$0xf]
          %v369 = vld [vmem:[%s335 + $0x68] sm:$0xf]
          %v370 = vld [vmem:[%s335 + $0x6c] sm:$0xf]
          %v371 = vld [vmem:[%s335 + $0x70] sm:$0xf]
          %v372 = vld [vmem:[%s335 + $0x74] sm:$0xf]
          %v373 = vld [vmem:[%s335 + $0x78] sm:$0xf]
          %v374 = vld [vmem:[%s335 + $0x7c] sm:$0xf]
          %v407 = vunpack.c.l.b16 %v343
          %v408 = vunpack.c.l.b16 %v344
          %v409 = vunpack.c.l.b16 %v345
          %v410 = vunpack.c.l.b16 %v346
          %v411 = vunpack.c.l.b16 %v347
          %v412 = vunpack.c.l.b16 %v348
          %v413 = vunpack.c.l.b16 %v349
          %v414 = vunpack.c.l.b16 %v350
          %v415 = vunpack.c.l.b16 %v351
          %v416 = vunpack.c.l.b16 %v352
          %v417 = vunpack.c.l.b16 %v353
          %v418 = vunpack.c.l.b16 %v354
          %v419 = vunpack.c.l.b16 %v355
          %v420 = vunpack.c.l.b16 %v356
          %v421 = vunpack.c.l.b16 %v357
          %v422 = vunpack.c.l.b16 %v358
          %v423 = vunpack.c.l.b16 %v359
          %v424 = vunpack.c.l.b16 %v360
          %v425 = vunpack.c.l.b16 %v361
          %v426 = vunpack.c.l.b16 %v362
          %v427 = vunpack.c.l.b16 %v363
          %v428 = vunpack.c.l.b16 %v364
          %v429 = vunpack.c.l.b16 %v365
          %v430 = vunpack.c.l.b16 %v366
          %v431 = vunpack.c.l.b16 %v367
          %v432 = vunpack.c.l.b16 %v368
          %v433 = vunpack.c.l.b16 %v369
          %v434 = vunpack.c.l.b16 %v370
          %v435 = vunpack.c.l.b16 %v371
          %v436 = vunpack.c.l.b16 %v372
          %v437 = vunpack.c.l.b16 %v373
          %v438 = vunpack.c.l.b16 %v374
          %v439 = vpack.c.b16 %v408, %v407
          %v440 = vpack.c.b16 %v410, %v409
          %v441 = vpack.c.b16 %v412, %v411
          %v442 = vpack.c.b16 %v414, %v413
          %v443 = vpack.c.b16 %v416, %v415
          %v444 = vpack.c.b16 %v418, %v417
          %v445 = vpack.c.b16 %v420, %v419
          %v446 = vpack.c.b16 %v422, %v421
          %v447 = vpack.c.b16 %v424, %v423
          %v448 = vpack.c.b16 %v426, %v425
          %v449 = vpack.c.b16 %v428, %v427
          %v450 = vpack.c.b16 %v430, %v429
          %v451 = vpack.c.b16 %v432, %v431
          %v452 = vpack.c.b16 %v434, %v433
          %v453 = vpack.c.b16 %v436, %v435
          %v454 = vpack.c.b16 %v438, %v437
          %471 = vst [vmem:[#allocation2] sm:$0xff] %v439
          %472 = vst [vmem:[#allocation2 + $0x10] sm:$0xff] %v440
          %473 = vst [vmem:[#allocation2 + $0x20] sm:$0xff] %v441
          %474 = vst [vmem:[#allocation2 + $0x30] sm:$0xff] %v442
          %475 = vst [vmem:[#allocation2 + $0x40] sm:$0xff] %v443
          %476 = vst [vmem:[#allocation2 + $0x50] sm:$0xff] %v444
          %477 = vst [vmem:[#allocation2 + $0x60] sm:$0xff] %v445
          %478 = vst [vmem:[#allocation2 + $0x70] sm:$0xff] %v446
          %479 = vst [vmem:[#allocation2 + $0x80] sm:$0xff] %v447
          %480 = vst [vmem:[#allocation2 + $0x90] sm:$0xff] %v448
          %481 = vst [vmem:[#allocation2 + $0xa0] sm:$0xff] %v449
          %482 = vst [vmem:[#allocation2 + $0xb0] sm:$0xff] %v450
          %483 = vst [vmem:[#allocation2 + $0xc0] sm:$0xff] %v451
          %484 = vst [vmem:[#allocation2 + $0xd0] sm:$0xff] %v452
          %485 = vst [vmem:[#allocation2 + $0xe0] sm:$0xff] %v453
          %486 = vst [vmem:[#allocation2 + $0xf0] sm:$0xff] %v454
          %v487 = vld [vmem:[%s5] sm:$0x1]
          %v488 = vld [vmem:[%s329] sm:$0xff]
          %v489 = vld [vmem:[%s329 + $0x8] sm:$0xff]
          %v490 = vld [vmem:[%s329 + $0x10] sm:$0xff]
          %v491 = vld [vmem:[%s329 + $0x18] sm:$0xff]
          %v492 = vld [vmem:[%s329 + $0x20] sm:$0xff]
          %v493 = vld [vmem:[%s329 + $0x28] sm:$0xff]
          %v494 = vld [vmem:[%s329 + $0x30] sm:$0xff]
          %v495 = vld [vmem:[%s329 + $0x38] sm:$0xff]
          %v496 = vld [vmem:[%s329 + $0x40] sm:$0xff]
          %v497 = vld [vmem:[%s329 + $0x48] sm:$0xff]
          %v498 = vld [vmem:[%s329 + $0x50] sm:$0xff]
          %v499 = vld [vmem:[%s329 + $0x58] sm:$0xff]
          %v500 = vld [vmem:[%s329 + $0x60] sm:$0xff]
          %v501 = vld [vmem:[%s329 + $0x68] sm:$0xff]
          %v502 = vld [vmem:[%s329 + $0x70] sm:$0xff]
          %v503 = vld [vmem:[%s329 + $0x78] sm:$0xff]
          %v504 = vld [vmem:[%s329 + $0x80] sm:$0xff]
          %v505 = vld [vmem:[%s329 + $0x88] sm:$0xff]
          %v506 = vld [vmem:[%s329 + $0x90] sm:$0xff]
          %v507 = vld [vmem:[%s329 + $0x98] sm:$0xff]
          %v508 = vld [vmem:[%s329 + $0xa0] sm:$0xff]
          %v509 = vld [vmem:[%s329 + $0xa8] sm:$0xff]
          %v510 = vld [vmem:[%s329 + $0xb0] sm:$0xff]
          %v511 = vld [vmem:[%s329 + $0xb8] sm:$0xff]
          %v512 = vld [vmem:[%s329 + $0xc0] sm:$0xff]
          %v513 = vld [vmem:[%s329 + $0xc8] sm:$0xff]
          %v514 = vld [vmem:[%s329 + $0xd0] sm:$0xff]
          %v515 = vld [vmem:[%s329 + $0xd8] sm:$0xff]
          %v516 = vld [vmem:[%s329 + $0xe0] sm:$0xff]
          %v517 = vld [vmem:[%s329 + $0xe8] sm:$0xff]
          %v518 = vld [vmem:[%s329 + $0xf0] sm:$0xff]
          %v519 = vld [vmem:[%s329 + $0xf8] sm:$0xff]
          %v520 = vld [vmem:[%s3] sm:$0x1]
          %522 = vset.pattern.permute.xlu0 0
          %523 = vperm.xlu0 %522, %v488
          %v524 = vpop.permute.xlu0 %523
          %527 = vset.pattern.permute.xlu0 0
          %528 = vperm.xlu0 %527, %v489
          %v529 = vpop.permute.xlu0 %528
          %532 = vset.pattern.permute.xlu0 0
          %533 = vperm.xlu0 %532, %v490
          %v534 = vpop.permute.xlu0 %533
          %537 = vset.pattern.permute.xlu0 0
          %538 = vperm.xlu0 %537, %v491
          %v539 = vpop.permute.xlu0 %538
          %542 = vset.pattern.permute.xlu0 0
          %543 = vperm.xlu0 %542, %v492
          %v544 = vpop.permute.xlu0 %543
          %547 = vset.pattern.permute.xlu0 0
          %548 = vperm.xlu0 %547, %v493
          %v549 = vpop.permute.xlu0 %548
          %552 = vset.pattern.permute.xlu0 0
          %553 = vperm.xlu0 %552, %v494
          %v554 = vpop.permute.xlu0 %553
          %557 = vset.pattern.permute.xlu0 0
          %558 = vperm.xlu0 %557, %v495
          %v559 = vpop.permute.xlu0 %558
          %562 = vset.pattern.permute.xlu0 0
          %563 = vperm.xlu0 %562, %v496
          %v564 = vpop.permute.xlu0 %563
          %567 = vset.pattern.permute.xlu0 0
          %568 = vperm.xlu0 %567, %v497
          %v569 = vpop.permute.xlu0 %568
          %572 = vset.pattern.permute.xlu0 0
          %573 = vperm.xlu0 %572, %v498
          %v574 = vpop.permute.xlu0 %573
          %577 = vset.pattern.permute.xlu0 0
          %578 = vperm.xlu0 %577, %v499
          %v579 = vpop.permute.xlu0 %578
          %582 = vset.pattern.permute.xlu0 0
          %583 = vperm.xlu0 %582, %v500
          %v584 = vpop.permute.xlu0 %583
          %587 = vset.pattern.permute.xlu0 0
          %588 = vperm.xlu0 %587, %v501
          %v589 = vpop.permute.xlu0 %588
          %592 = vset.pattern.permute.xlu0 0
          %593 = vperm.xlu0 %592, %v502
          %v594 = vpop.permute.xlu0 %593
          %597 = vset.pattern.permute.xlu0 0
          %598 = vperm.xlu0 %597, %v503
          %v599 = vpop.permute.xlu0 %598
          %602 = vset.pattern.permute.xlu0 0
          %603 = vperm.xlu0 %602, %v504
          %v604 = vpop.permute.xlu0 %603
          %607 = vset.pattern.permute.xlu0 0
          %608 = vperm.xlu0 %607, %v505
          %v609 = vpop.permute.xlu0 %608
          %612 = vset.pattern.permute.xlu0 0
          %613 = vperm.xlu0 %612, %v506
          %v614 = vpop.permute.xlu0 %613
          %617 = vset.pattern.permute.xlu0 0
          %618 = vperm.xlu0 %617, %v507
          %v619 = vpop.permute.xlu0 %618
          %622 = vset.pattern.permute.xlu0 0
          %623 = vperm.xlu0 %622, %v508
          %v624 = vpop.permute.xlu0 %623
          %627 = vset.pattern.permute.xlu0 0
          %628 = vperm.xlu0 %627, %v509
          %v629 = vpop.permute.xlu0 %628
          %632 = vset.pattern.permute.xlu0 0
          %633 = vperm.xlu0 %632, %v510
          %v634 = vpop.permute.xlu0 %633
          %637 = vset.pattern.permute.xlu0 0
          %638 = vperm.xlu0 %637, %v511
          %v639 = vpop.permute.xlu0 %638
          %642 = vset.pattern.permute.xlu0 0
          %643 = vperm.xlu0 %642, %v512
          %v644 = vpop.permute.xlu0 %643
          %647 = vset.pattern.permute.xlu0 0
          %648 = vperm.xlu0 %647, %v513
          %v649 = vpop.permute.xlu0 %648
          %652 = vset.pattern.permute.xlu0 0
          %653 = vperm.xlu0 %652, %v514
          %v654 = vpop.permute.xlu0 %653
          %657 = vset.pattern.permute.xlu0 0
          %658 = vperm.xlu0 %657, %v515
          %v659 = vpop.permute.xlu0 %658
          %662 = vset.pattern.permute.xlu0 0
          %663 = vperm.xlu0 %662, %v516
          %v664 = vpop.permute.xlu0 %663
          %667 = vset.pattern.permute.xlu0 0
          %668 = vperm.xlu0 %667, %v517
          %v669 = vpop.permute.xlu0 %668
          %672 = vset.pattern.permute.xlu0 0
          %673 = vperm.xlu0 %672, %v518
          %v674 = vpop.permute.xlu0 %673
          %677 = vset.pattern.permute.xlu0 0
          %678 = vperm.xlu0 %677, %v519
          %v679 = vpop.permute.xlu0 %678
          %v681 = vlaneseq
          %v682 = vshrl.u32 %v681, 7
          %v683 = vsub.s32 0, %v682
          %v684 = vrot.slane %v520, %v683
          %v685 = vmul.f32 %v524, %v684
          %v686 = vmul.f32 %v529, %v684
          %v687 = vmul.f32 %v534, %v684
          %v688 = vmul.f32 %v539, %v684
          %v689 = vmul.f32 %v544, %v684
          %v690 = vmul.f32 %v549, %v684
          %v691 = vmul.f32 %v554, %v684
          %v692 = vmul.f32 %v559, %v684
          %v693 = vmul.f32 %v564, %v684
          %v694 = vmul.f32 %v569, %v684
          %v695 = vmul.f32 %v574, %v684
          %v696 = vmul.f32 %v579, %v684
          %v697 = vmul.f32 %v584, %v684
          %v698 = vmul.f32 %v589, %v684
          %v699 = vmul.f32 %v594, %v684
          %v700 = vmul.f32 %v599, %v684
          %v701 = vmul.f32 %v604, %v684
          %v702 = vmul.f32 %v609, %v684
          %v703 = vmul.f32 %v614, %v684
          %v704 = vmul.f32 %v619, %v684
          %v705 = vmul.f32 %v624, %v684
          %v706 = vmul.f32 %v629, %v684
          %v707 = vmul.f32 %v634, %v684
          %v708 = vmul.f32 %v639, %v684
          %v709 = vmul.f32 %v644, %v684
          %v710 = vmul.f32 %v649, %v684
          %v711 = vmul.f32 %v654, %v684
          %v712 = vmul.f32 %v659, %v684
          %v713 = vmul.f32 %v664, %v684
          %v714 = vmul.f32 %v669, %v684
          %v715 = vmul.f32 %v674, %v684
          %v716 = vmul.f32 %v679, %v684
          %v718 = vlaneseq
          %v719 = vshrl.u32 %v718, 7
          %v720 = vsub.s32 0, %v719
          %v721 = vrot.slane %v487, %v720
          %v723 = vadd.f32 %v721, %v685
          %v724 = vadd.f32 %v721, %v686
          %v725 = vadd.f32 %v721, %v687
          %v726 = vadd.f32 %v721, %v688
          %v727 = vadd.f32 %v721, %v689
          %v728 = vadd.f32 %v721, %v690
          %v729 = vadd.f32 %v721, %v691
          %v730 = vadd.f32 %v721, %v692
          %v731 = vadd.f32 %v721, %v693
          %v732 = vadd.f32 %v721, %v694
          %v733 = vadd.f32 %v721, %v695
          %v734 = vadd.f32 %v721, %v696
          %v735 = vadd.f32 %v721, %v697
          %v736 = vadd.f32 %v721, %v698
          %v737 = vadd.f32 %v721, %v699
          %v738 = vadd.f32 %v721, %v700
          %v739 = vadd.f32 %v721, %v701
          %v740 = vadd.f32 %v721, %v702
          %v741 = vadd.f32 %v721, %v703
          %v742 = vadd.f32 %v721, %v704
          %v743 = vadd.f32 %v721, %v705
          %v744 = vadd.f32 %v721, %v706
          %v745 = vadd.f32 %v721, %v707
          %v746 = vadd.f32 %v721, %v708
          %v747 = vadd.f32 %v721, %v709
          %v748 = vadd.f32 %v721, %v710
          %v749 = vadd.f32 %v721, %v711
          %v750 = vadd.f32 %v721, %v712
          %v751 = vadd.f32 %v721, %v713
          %v752 = vadd.f32 %v721, %v714
          %v753 = vadd.f32 %v721, %v715
          %v754 = vadd.f32 %v721, %v716
          %v755 = vld [vmem:[%s3 + $0x1] sm:$0x1]
          %756 = vset.pattern.permute.xlu0 1
          %757 = vperm.xlu0 %756, %v488
          %v758 = vpop.permute.xlu0 %757
          %760 = vset.pattern.permute.xlu0 1
          %761 = vperm.xlu0 %760, %v489
          %v762 = vpop.permute.xlu0 %761
          %764 = vset.pattern.permute.xlu0 1
          %765 = vperm.xlu0 %764, %v490
          %v766 = vpop.permute.xlu0 %765
          %768 = vset.pattern.permute.xlu0 1
          %769 = vperm.xlu0 %768, %v491
          %v770 = vpop.permute.xlu0 %769
          %772 = vset.pattern.permute.xlu0 1
          %773 = vperm.xlu0 %772, %v492
          %v774 = vpop.permute.xlu0 %773
          %776 = vset.pattern.permute.xlu0 1
          %777 = vperm.xlu0 %776, %v493
          %v778 = vpop.permute.xlu0 %777
          %780 = vset.pattern.permute.xlu0 1
          %781 = vperm.xlu0 %780, %v494
          %v782 = vpop.permute.xlu0 %781
          %784 = vset.pattern.permute.xlu0 1
          %785 = vperm.xlu0 %784, %v495
          %v786 = vpop.permute.xlu0 %785
          %788 = vset.pattern.permute.xlu0 1
          %789 = vperm.xlu0 %788, %v496
          %v790 = vpop.permute.xlu0 %789
          %792 = vset.pattern.permute.xlu0 1
          %793 = vperm.xlu0 %792, %v497
          %v794 = vpop.permute.xlu0 %793
          %796 = vset.pattern.permute.xlu0 1
          %797 = vperm.xlu0 %796, %v498
          %v798 = vpop.permute.xlu0 %797
          %800 = vset.pattern.permute.xlu0 1
          %801 = vperm.xlu0 %800, %v499
          %v802 = vpop.permute.xlu0 %801
          %804 = vset.pattern.permute.xlu0 1
          %805 = vperm.xlu0 %804, %v500
          %v806 = vpop.permute.xlu0 %805
          %808 = vset.pattern.permute.xlu0 1
          %809 = vperm.xlu0 %808, %v501
          %v810 = vpop.permute.xlu0 %809
          %812 = vset.pattern.permute.xlu0 1
          %813 = vperm.xlu0 %812, %v502
          %v814 = vpop.permute.xlu0 %813
          %816 = vset.pattern.permute.xlu0 1
          %817 = vperm.xlu0 %816, %v503
          %v818 = vpop.permute.xlu0 %817
          %820 = vset.pattern.permute.xlu0 1
          %821 = vperm.xlu0 %820, %v504
          %v822 = vpop.permute.xlu0 %821
          %824 = vset.pattern.permute.xlu0 1
          %825 = vperm.xlu0 %824, %v505
          %v826 = vpop.permute.xlu0 %825
          %828 = vset.pattern.permute.xlu0 1
          %829 = vperm.xlu0 %828, %v506
          %v830 = vpop.permute.xlu0 %829
          %832 = vset.pattern.permute.xlu0 1
          %833 = vperm.xlu0 %832, %v507
          %v834 = vpop.permute.xlu0 %833
          %836 = vset.pattern.permute.xlu0 1
          %837 = vperm.xlu0 %836, %v508
          %v838 = vpop.permute.xlu0 %837
          %840 = vset.pattern.permute.xlu0 1
          %841 = vperm.xlu0 %840, %v509
          %v842 = vpop.permute.xlu0 %841
          %844 = vset.pattern.permute.xlu0 1
          %845 = vperm.xlu0 %844, %v510
          %v846 = vpop.permute.xlu0 %845
          %848 = vset.pattern.permute.xlu0 1
          %849 = vperm.xlu0 %848, %v511
          %v850 = vpop.permute.xlu0 %849
          %852 = vset.pattern.permute.xlu0 1
          %853 = vperm.xlu0 %852, %v512
          %v854 = vpop.permute.xlu0 %853
          %856 = vset.pattern.permute.xlu0 1
          %857 = vperm.xlu0 %856, %v513
          %v858 = vpop.permute.xlu0 %857
          %860 = vset.pattern.permute.xlu0 1
          %861 = vperm.xlu0 %860, %v514
          %v862 = vpop.permute.xlu0 %861
          %864 = vset.pattern.permute.xlu0 1
          %865 = vperm.xlu0 %864, %v515
          %v866 = vpop.permute.xlu0 %865
          %868 = vset.pattern.permute.xlu0 1
          %869 = vperm.xlu0 %868, %v516
          %v870 = vpop.permute.xlu0 %869
          %872 = vset.pattern.permute.xlu0 1
          %873 = vperm.xlu0 %872, %v517
          %v874 = vpop.permute.xlu0 %873
          %876 = vset.pattern.permute.xlu0 1
          %877 = vperm.xlu0 %876, %v518
          %v878 = vpop.permute.xlu0 %877
          %880 = vset.pattern.permute.xlu0 1
          %881 = vperm.xlu0 %880, %v519
          %v882 = vpop.permute.xlu0 %881
          %v884 = vlaneseq
          %v885 = vshrl.u32 %v884, 7
          %v886 = vsub.s32 0, %v885
          %v887 = vrot.slane %v755, %v886
          %v888 = vmul.f32 %v758, %v887
          %v889 = vmul.f32 %v762, %v887
          %v890 = vmul.f32 %v766, %v887
          %v891 = vmul.f32 %v770, %v887
          %v892 = vmul.f32 %v774, %v887
          %v893 = vmul.f32 %v778, %v887
          %v894 = vmul.f32 %v782, %v887
          %v895 = vmul.f32 %v786, %v887
          %v896 = vmul.f32 %v790, %v887
          %v897 = vmul.f32 %v794, %v887
          %v898 = vmul.f32 %v798, %v887
          %v899 = vmul.f32 %v802, %v887
          %v900 = vmul.f32 %v806, %v887
          %v901 = vmul.f32 %v810, %v887
          %v902 = vmul.f32 %v814, %v887
          %v903 = vmul.f32 %v818, %v887
          %v904 = vmul.f32 %v822, %v887
          %v905 = vmul.f32 %v826, %v887
          %v906 = vmul.f32 %v830, %v887
          %v907 = vmul.f32 %v834, %v887
          %v908 = vmul.f32 %v838, %v887
          %v909 = vmul.f32 %v842, %v887
          %v910 = vmul.f32 %v846, %v887
          %v911 = vmul.f32 %v850, %v887
          %v912 = vmul.f32 %v854, %v887
          %v913 = vmul.f32 %v858, %v887
          %v914 = vmul.f32 %v862, %v887
          %v915 = vmul.f32 %v866, %v887
          %v916 = vmul.f32 %v870, %v887
          %v917 = vmul.f32 %v874, %v887
          %v918 = vmul.f32 %v878, %v887
          %v919 = vmul.f32 %v882, %v887
          %v920 = vadd.f32 %v723, %v888
          %v921 = vadd.f32 %v724, %v889
          %v922 = vadd.f32 %v725, %v890
          %v923 = vadd.f32 %v726, %v891
          %v924 = vadd.f32 %v727, %v892
          %v925 = vadd.f32 %v728, %v893
          %v926 = vadd.f32 %v729, %v894
          %v927 = vadd.f32 %v730, %v895
          %v928 = vadd.f32 %v731, %v896
          %v929 = vadd.f32 %v732, %v897
          %v930 = vadd.f32 %v733, %v898
          %v931 = vadd.f32 %v734, %v899
          %v932 = vadd.f32 %v735, %v900
          %v933 = vadd.f32 %v736, %v901
          %v934 = vadd.f32 %v737, %v902
          %v935 = vadd.f32 %v738, %v903
          %v936 = vadd.f32 %v739, %v904
          %v937 = vadd.f32 %v740, %v905
          %v938 = vadd.f32 %v741, %v906
          %v939 = vadd.f32 %v742, %v907
          %v940 = vadd.f32 %v743, %v908
          %v941 = vadd.f32 %v744, %v909
          %v942 = vadd.f32 %v745, %v910
          %v943 = vadd.f32 %v746, %v911
          %v944 = vadd.f32 %v747, %v912
          %v945 = vadd.f32 %v748, %v913
          %v946 = vadd.f32 %v749, %v914
          %v947 = vadd.f32 %v750, %v915
          %v948 = vadd.f32 %v751, %v916
          %v949 = vadd.f32 %v752, %v917
          %v950 = vadd.f32 %v753, %v918
          %v951 = vadd.f32 %v754, %v919
          %v952 = vtanh.pop %v920
          %v953 = vtanh.pop %v921
          %v954 = vtanh.pop %v922
          %v955 = vtanh.pop %v923
          %v956 = vtanh.pop %v924
          %v957 = vtanh.pop %v925
          %v958 = vtanh.pop %v926
          %v959 = vtanh.pop %v927
          %v960 = vtanh.pop %v928
          %v961 = vtanh.pop %v929
          %v962 = vtanh.pop %v930
          %v963 = vtanh.pop %v931
          %v964 = vtanh.pop %v932
          %v965 = vtanh.pop %v933
          %v966 = vtanh.pop %v934
          %v967 = vtanh.pop %v935
          %v968 = vtanh.pop %v936
          %v969 = vtanh.pop %v937
          %v970 = vtanh.pop %v938
          %v971 = vtanh.pop %v939
          %v972 = vtanh.pop %v940
          %v973 = vtanh.pop %v941
          %v974 = vtanh.pop %v942
          %v975 = vtanh.pop %v943
          %v976 = vtanh.pop %v944
          %v977 = vtanh.pop %v945
          %v978 = vtanh.pop %v946
          %v979 = vtanh.pop %v947
          %v980 = vtanh.pop %v948
          %v981 = vtanh.pop %v949
          %v982 = vtanh.pop %v950
          %v983 = vtanh.pop %v951
          %v984 = vld [vmem:[%s4] sm:$0xff]
          %v985 = vld [vmem:[%s4 + $0x8] sm:$0xff]
          %v986 = vld [vmem:[%s4 + $0x10] sm:$0xff]
          %v987 = vld [vmem:[%s4 + $0x18] sm:$0xff]
          %v988 = vld [vmem:[%s4 + $0x20] sm:$0xff]
          %v989 = vld [vmem:[%s4 + $0x28] sm:$0xff]
          %v990 = vld [vmem:[%s4 + $0x30] sm:$0xff]
          %v991 = vld [vmem:[%s4 + $0x38] sm:$0xff]
          %v992 = vld [vmem:[%s4 + $0x40] sm:$0xff]
          %v993 = vld [vmem:[%s4 + $0x48] sm:$0xff]
          %v994 = vld [vmem:[%s4 + $0x50] sm:$0xff]
          %v995 = vld [vmem:[%s4 + $0x58] sm:$0xff]
          %v996 = vld [vmem:[%s4 + $0x60] sm:$0xff]
          %v997 = vld [vmem:[%s4 + $0x68] sm:$0xff]
          %v998 = vld [vmem:[%s4 + $0x70] sm:$0xff]
          %v999 = vld [vmem:[%s4 + $0x78] sm:$0xff]
          %v1000 = vld [vmem:[%s5 + $0x1] sm:$0x1]
          %v1002 = vlaneseq
          %v1003 = vshrl.u32 %v1002, 7
          %v1004 = vsub.s32 0, %v1003
          %v1005 = vrot.slane %v1000, %v1004
          %1007 = vmatprep.subr.mxu0 0.0
          %1008 = vmatpush1.msra.mxu0 %v984
          %1009 = vmatprep.subr.mxu0 0.0
          %1010 = vmatpush1.msra.mxu0 %v985
          %1011 = vmatprep.subr.mxu0 0.0
          %1012 = vmatpush1.msra.mxu0 %v986
          %1013 = vmatprep.subr.mxu0 0.0
          %1014 = vmatpush1.msra.mxu0 %v987
          %1015 = vmatprep.subr.mxu0 0.0
          %1016 = vmatpush1.msra.mxu0 %v988
          %1017 = vmatprep.subr.mxu0 0.0
          %1018 = vmatpush1.msra.mxu0 %v989
          %1019 = vmatprep.subr.mxu0 0.0
          %1020 = vmatpush1.msra.mxu0 %v990
          %1021 = vmatprep.subr.mxu0 0.0
          %1022 = vmatpush1.msra.mxu0 %v991
          %1023 = vmatprep.subr.mxu0 0.0
          %1024 = vmatpush1.msra.mxu0 %v992
          %1025 = vmatprep.subr.mxu0 0.0
          %1026 = vmatpush1.msra.mxu0 %v993
          %1027 = vmatprep.subr.mxu0 0.0
          %1028 = vmatpush1.msra.mxu0 %v994
          %1029 = vmatprep.subr.mxu0 0.0
          %1030 = vmatpush1.msra.mxu0 %v995
          %1031 = vmatprep.subr.mxu0 0.0
          %1032 = vmatpush1.msra.mxu0 %v996
          %1033 = vmatprep.subr.mxu0 0.0
          %1034 = vmatpush1.msra.mxu0 %v997
          %1035 = vmatprep.subr.mxu0 0.0
          %1036 = vmatpush1.msra.mxu0 %v998
          %1037 = vmatprep.subr.mxu0 0.0
          %1038 = vmatpush1.msra.mxu0 %v999
          %1039 = vmatprep.subr.mxu0 0.0
          %1040 = vmatpush1.msra.mxu0 0.0
          %1041 = vmatprep.subr.mxu0 0.0
          %1042 = vmatpush1.msra.mxu0 0.0
          %1043 = vmatprep.subr.mxu0 0.0
          %1044 = vmatpush1.msra.mxu0 0.0
          %1045 = vmatprep.subr.mxu0 0.0
          %1046 = vmatpush1.msra.mxu0 0.0
          %1047 = vmatprep.subr.mxu0 0.0
          %1048 = vmatpush1.msra.mxu0 0.0
          %1049 = vmatprep.subr.mxu0 0.0
          %1050 = vmatpush1.msra.mxu0 0.0
          %1051 = vmatprep.subr.mxu0 0.0
          %1052 = vmatpush1.msra.mxu0 0.0
          %1053 = vmatprep.subr.mxu0 0.0
          %1054 = vmatpush1.msra.mxu0 0.0
          %1055 = vmatprep.subr.mxu0 0.0
          %1056 = vmatpush1.msra.mxu0 0.0
          %1057 = vmatprep.subr.mxu0 0.0
          %1058 = vmatpush1.msra.mxu0 0.0
          %1059 = vmatprep.subr.mxu0 0.0
          %1060 = vmatpush1.msra.mxu0 0.0
          %1061 = vmatprep.subr.mxu0 0.0
          %1062 = vmatpush1.msra.mxu0 0.0
          %1063 = vmatprep.subr.mxu0 0.0
          %1064 = vmatpush1.msra.mxu0 0.0
          %1065 = vmatprep.subr.mxu0 0.0
          %1066 = vmatpush1.msra.mxu0 0.0
          %1067 = vmatprep.subr.mxu0 0.0
          %1068 = vmatpush1.msra.mxu0 0.0
          %1069 = vmatprep.subr.mxu0 0.0
          %1070 = vmatpush1.msra.mxu0 0.0
          %1071 = vmatprep.mubr.f32.mxu0 0.0
          %1072 = vmatmul.mubr.f32.gmra.mrb[0].mxu0 %v952
          %v1073 = vpop.f32.mrb[0].mxu0
          %v1074 = vadd.f32 %v1005, %v1073
          %v1075 = vpop.f32.mrb[0].mxu0
          %1076 = vmatprep.mubr.f32.mxu0 0.0
          %1077 = vmatmul.mubr.f32.gmra.mrb[0].mxu0 %v953
          %v1078 = vpop.f32.mrb[0].mxu0
          %v1079 = vadd.f32 %v1005, %v1078
          %v1080 = vpop.f32.mrb[0].mxu0
          %1081 = vmatprep.mubr.f32.mxu0 0.0
          %1082 = vmatmul.mubr.f32.gmra.mrb[0].mxu0 %v954
          %v1083 = vpop.f32.mrb[0].mxu0
          %v1084 = vadd.f32 %v1005, %v1083
          %v1085 = vpop.f32.mrb[0].mxu0
          %1086 = vmatprep.mubr.f32.mxu0 0.0
          %1087 = vmatmul.mubr.f32.gmra.mrb[0].mxu0 %v955
          %v1088 = vpop.f32.mrb[0].mxu0
          %v1089 = vadd.f32 %v1005, %v1088
          %v1090 = vpop.f32.mrb[0].mxu0
          %1091 = vmatprep.mubr.f32.mxu0 0.0
          %1092 = vmatmul.mubr.f32.gmra.mrb[0].mxu0 %v956
          %v1093 = vpop.f32.mrb[0].mxu0
          %v1094 = vadd.f32 %v1005, %v1093
          %v1095 = vpop.f32.mrb[0].mxu0
          %1096 = vmatprep.mubr.f32.mxu0 0.0
          %1097 = vmatmul.mubr.f32.gmra.mrb[0].mxu0 %v957
          %v1098 = vpop.f32.mrb[0].mxu0
          %v1099 = vadd.f32 %v1005, %v1098
          %v1100 = vpop.f32.mrb[0].mxu0
          %1101 = vmatprep.mubr.f32.mxu0 0.0
          %1102 = vmatmul.mubr.f32.gmra.mrb[0].mxu0 %v958
          %v1103 = vpop.f32.mrb[0].mxu0
          %v1104 = vadd.f32 %v1005, %v1103
          %v1105 = vpop.f32.mrb[0].mxu0
          %1106 = vmatprep.mubr.f32.mxu0 0.0
          %1107 = vmatmul.mubr.f32.gmra.mrb[0].mxu0 %v959
          %v1108 = vpop.f32.mrb[0].mxu0
          %v1109 = vadd.f32 %v1005, %v1108
          %v1110 = vpop.f32.mrb[0].mxu0
          %1111 = vmatprep.mubr.f32.mxu0 0.0
          %1112 = vmatmul.mubr.f32.gmra.mrb[0].mxu0 %v960
          %v1113 = vpop.f32.mrb[0].mxu0
          %v1114 = vadd.f32 %v1005, %v1113
          %v1115 = vpop.f32.mrb[0].mxu0
          %1116 = vmatprep.mubr.f32.mxu0 0.0
          %1117 = vmatmul.mubr.f32.gmra.mrb[0].mxu0 %v961
          %v1118 = vpop.f32.mrb[0].mxu0
          %v1119 = vadd.f32 %v1005, %v1118
          %v1120 = vpop.f32.mrb[0].mxu0
          %1121 = vmatprep.mubr.f32.mxu0 0.0
          %1122 = vmatmul.mubr.f32.gmra.mrb[0].mxu0 %v962
          %v1123 = vpop.f32.mrb[0].mxu0
          %v1124 = vadd.f32 %v1005, %v1123
          %v1125 = vpop.f32.mrb[0].mxu0
          %1126 = vmatprep.mubr.f32.mxu0 0.0
          %1127 = vmatmul.mubr.f32.gmra.mrb[0].mxu0 %v963
          %v1128 = vpop.f32.mrb[0].mxu0
          %v1129 = vadd.f32 %v1005, %v1128
          %v1130 = vpop.f32.mrb[0].mxu0
          %1131 = vmatprep.mubr.f32.mxu0 0.0
          %1132 = vmatmul.mubr.f32.gmra.mrb[0].mxu0 %v964
          %v1133 = vpop.f32.mrb[0].mxu0
          %v1134 = vadd.f32 %v1005, %v1133
          %v1135 = vpop.f32.mrb[0].mxu0
          %1136 = vmatprep.mubr.f32.mxu0 0.0
          %1137 = vmatmul.mubr.f32.gmra.mrb[0].mxu0 %v965
          %v1138 = vpop.f32.mrb[0].mxu0
          %v1139 = vadd.f32 %v1005, %v1138
          %v1140 = vpop.f32.mrb[0].mxu0
          %1141 = vmatprep.mubr.f32.mxu0 0.0
          %1142 = vmatmul.mubr.f32.gmra.mrb[0].mxu0 %v966
          %v1143 = vpop.f32.mrb[0].mxu0
          %v1144 = vadd.f32 %v1005, %v1143
          %v1145 = vpop.f32.mrb[0].mxu0
          %1146 = vmatprep.mubr.f32.mxu0 0.0
          %1147 = vmatmul.mubr.f32.gmra.mrb[0].mxu0 %v967
          %v1148 = vpop.f32.mrb[0].mxu0
          %v1149 = vadd.f32 %v1005, %v1148
          %v1150 = vpop.f32.mrb[0].mxu0
          %1151 = vmatprep.mubr.f32.mxu0 0.0
          %1152 = vmatmul.mubr.f32.gmra.mrb[0].mxu0 %v968
          %v1153 = vpop.f32.mrb[0].mxu0
          %v1154 = vadd.f32 %v1005, %v1153
          %v1155 = vpop.f32.mrb[0].mxu0
          %1156 = vmatprep.mubr.f32.mxu0 0.0
          %1157 = vmatmul.mubr.f32.gmra.mrb[0].mxu0 %v969
          %v1158 = vpop.f32.mrb[0].mxu0
          %v1159 = vadd.f32 %v1005, %v1158
          %v1160 = vpop.f32.mrb[0].mxu0
          %1161 = vmatprep.mubr.f32.mxu0 0.0
          %1162 = vmatmul.mubr.f32.gmra.mrb[0].mxu0 %v970
          %v1163 = vpop.f32.mrb[0].mxu0
          %v1164 = vadd.f32 %v1005, %v1163
          %v1165 = vpop.f32.mrb[0].mxu0
          %1166 = vmatprep.mubr.f32.mxu0 0.0
          %1167 = vmatmul.mubr.f32.gmra.mrb[0].mxu0 %v971
          %v1168 = vpop.f32.mrb[0].mxu0
          %v1169 = vadd.f32 %v1005, %v1168
          %v1170 = vpop.f32.mrb[0].mxu0
          %1171 = vmatprep.mubr.f32.mxu0 0.0
          %1172 = vmatmul.mubr.f32.gmra.mrb[0].mxu0 %v972
          %v1173 = vpop.f32.mrb[0].mxu0
          %v1174 = vadd.f32 %v1005, %v1173
          %v1175 = vpop.f32.mrb[0].mxu0
          %1176 = vmatprep.mubr.f32.mxu0 0.0
          %1177 = vmatmul.mubr.f32.gmra.mrb[0].mxu0 %v973
          %v1178 = vpop.f32.mrb[0].mxu0
          %v1179 = vadd.f32 %v1005, %v1178
          %v1180 = vpop.f32.mrb[0].mxu0
          %1181 = vmatprep.mubr.f32.mxu0 0.0
          %1182 = vmatmul.mubr.f32.gmra.mrb[0].mxu0 %v974
          %v1183 = vpop.f32.mrb[0].mxu0
          %v1184 = vadd.f32 %v1005, %v1183
          %v1185 = vpop.f32.mrb[0].mxu0
          %1186 = vmatprep.mubr.f32.mxu0 0.0
          %1187 = vmatmul.mubr.f32.gmra.mrb[0].mxu0 %v975
          %v1188 = vpop.f32.mrb[0].mxu0
          %v1189 = vadd.f32 %v1005, %v1188
          %v1190 = vpop.f32.mrb[0].mxu0
          %1191 = vmatprep.mubr.f32.mxu0 0.0
          %1192 = vmatmul.mubr.f32.gmra.mrb[0].mxu0 %v976
          %v1193 = vpop.f32.mrb[0].mxu0
          %v1194 = vadd.f32 %v1005, %v1193
          %v1195 = vpop.f32.mrb[0].mxu0
          %1196 = vmatprep.mubr.f32.mxu0 0.0
          %1197 = vmatmul.mubr.f32.gmra.mrb[0].mxu0 %v977
          %v1198 = vpop.f32.mrb[0].mxu0
          %v1199 = vadd.f32 %v1005, %v1198
          %v1200 = vpop.f32.mrb[0].mxu0
          %1201 = vmatprep.mubr.f32.mxu0 0.0
          %1202 = vmatmul.mubr.f32.gmra.mrb[0].mxu0 %v978
          %v1203 = vpop.f32.mrb[0].mxu0
          %v1204 = vadd.f32 %v1005, %v1203
          %v1205 = vpop.f32.mrb[0].mxu0
          %1206 = vmatprep.mubr.f32.mxu0 0.0
          %1207 = vmatmul.mubr.f32.gmra.mrb[0].mxu0 %v979
          %v1208 = vpop.f32.mrb[0].mxu0
          %v1209 = vadd.f32 %v1005, %v1208
          %v1210 = vpop.f32.mrb[0].mxu0
          %1211 = vmatprep.mubr.f32.mxu0 0.0
          %1212 = vmatmul.mubr.f32.gmra.mrb[0].mxu0 %v980
          %v1213 = vpop.f32.mrb[0].mxu0
          %v1214 = vadd.f32 %v1005, %v1213
          %v1215 = vpop.f32.mrb[0].mxu0
          %1216 = vmatprep.mubr.f32.mxu0 0.0
          %1217 = vmatmul.mubr.f32.gmra.mrb[0].mxu0 %v981
          %v1218 = vpop.f32.mrb[0].mxu0
          %v1219 = vadd.f32 %v1005, %v1218
          %v1220 = vpop.f32.mrb[0].mxu0
          %1221 = vmatprep.mubr.f32.mxu0 0.0
          %1222 = vmatmul.mubr.f32.gmra.mrb[0].mxu0 %v982
          %v1223 = vpop.f32.mrb[0].mxu0
          %v1224 = vadd.f32 %v1005, %v1223
          %v1225 = vpop.f32.mrb[0].mxu0
          %1226 = vmatprep.mubr.f32.mxu0 0.0
          %1227 = vmatmul.mubr.f32.gmra.mrb[0].mxu0 %v983
          %v1228 = vpop.f32.mrb[0].mxu0
          %v1229 = vadd.f32 %v1005, %v1228
          %v1230 = vpop.f32.mrb[0].mxu0
          %1231 = vdwg.mxu0
          %v1232 = vtanh.pop %v1074
          %v1233 = vtanh.pop %v1079
          %v1234 = vtanh.pop %v1084
          %v1235 = vtanh.pop %v1089
          %v1236 = vtanh.pop %v1094
          %v1237 = vtanh.pop %v1099
          %v1238 = vtanh.pop %v1104
          %v1239 = vtanh.pop %v1109
          %v1240 = vtanh.pop %v1114
          %v1241 = vtanh.pop %v1119
          %v1242 = vtanh.pop %v1124
          %v1243 = vtanh.pop %v1129
          %v1244 = vtanh.pop %v1134
          %v1245 = vtanh.pop %v1139
          %v1246 = vtanh.pop %v1144
          %v1247 = vtanh.pop %v1149
          %v1248 = vtanh.pop %v1154
          %v1249 = vtanh.pop %v1159
          %v1250 = vtanh.pop %v1164
          %v1251 = vtanh.pop %v1169
          %v1252 = vtanh.pop %v1174
          %v1253 = vtanh.pop %v1179
          %v1254 = vtanh.pop %v1184
          %v1255 = vtanh.pop %v1189
          %v1256 = vtanh.pop %v1194
          %v1257 = vtanh.pop %v1199
          %v1258 = vtanh.pop %v1204
          %v1259 = vtanh.pop %v1209
          %v1260 = vtanh.pop %v1214
          %v1261 = vtanh.pop %v1219
          %v1262 = vtanh.pop %v1224
          %v1263 = vtanh.pop %v1229
          %v1264 = vpack.c.bf16 %v1233, %v1232
          %v1265 = vpack.c.bf16 %v1235, %v1234
          %v1266 = vpack.c.bf16 %v1237, %v1236
          %v1267 = vpack.c.bf16 %v1239, %v1238
          %v1268 = vpack.c.bf16 %v1241, %v1240
          %v1269 = vpack.c.bf16 %v1243, %v1242
          %v1270 = vpack.c.bf16 %v1245, %v1244
          %v1271 = vpack.c.bf16 %v1247, %v1246
          %v1272 = vpack.c.bf16 %v1249, %v1248
          %v1273 = vpack.c.bf16 %v1251, %v1250
          %v1274 = vpack.c.bf16 %v1253, %v1252
          %v1275 = vpack.c.bf16 %v1255, %v1254
          %v1276 = vpack.c.bf16 %v1257, %v1256
          %v1277 = vpack.c.bf16 %v1259, %v1258
          %v1278 = vpack.c.bf16 %v1261, %v1260
          %v1279 = vpack.c.bf16 %v1263, %v1262
          %1280 = vst [vmem:[#allocation2 + $0x8] sm:$0xff] %v1264
          %1281 = vst [vmem:[#allocation2 + $0x18] sm:$0xff] %v1265
          %1282 = vst [vmem:[#allocation2 + $0x28] sm:$0xff] %v1266
          %1283 = vst [vmem:[#allocation2 + $0x38] sm:$0xff] %v1267
          %1284 = vst [vmem:[#allocation2 + $0x48] sm:$0xff] %v1268
          %1285 = vst [vmem:[#allocation2 + $0x58] sm:$0xff] %v1269
          %1286 = vst [vmem:[#allocation2 + $0x68] sm:$0xff] %v1270
          %1287 = vst [vmem:[#allocation2 + $0x78] sm:$0xff] %v1271
          %1288 = vst [vmem:[#allocation2 + $0x88] sm:$0xff] %v1272
          %1289 = vst [vmem:[#allocation2 + $0x98] sm:$0xff] %v1273
          %1290 = vst [vmem:[#allocation2 + $0xa8] sm:$0xff] %v1274
          %1291 = vst [vmem:[#allocation2 + $0xb8] sm:$0xff] %v1275
          %1292 = vst [vmem:[#allocation2 + $0xc8] sm:$0xff] %v1276
          %1293 = vst [vmem:[#allocation2 + $0xd8] sm:$0xff] %v1277
          %1294 = vst [vmem:[#allocation2 + $0xe8] sm:$0xff] %v1278
          %1295 = vst [vmem:[#allocation2 + $0xf8] sm:$0xff] %v1279
        $region52: #{pod_deeponet_forward.1} parent=47 // pred_fallthru
          _
        %v1296 = vld [vmem:[%s323] sm:$0xff]
        %v1297 = vld [vmem:[%s323 + $0x8] sm:$0xff]
        %v1298 = vld [vmem:[#allocation2] sm:$0xff]
        %v1299 = vld [vmem:[#allocation2 + $0x8] sm:$0xff]
        %v1300 = vld [vmem:[#allocation2 + $0x10] sm:$0xff]
        %v1301 = vld [vmem:[#allocation2 + $0x18] sm:$0xff]
        %v1302 = vld [vmem:[#allocation2 + $0x20] sm:$0xff]
        %v1303 = vld [vmem:[#allocation2 + $0x28] sm:$0xff]
        %v1304 = vld [vmem:[#allocation2 + $0x30] sm:$0xff]
        %v1305 = vld [vmem:[#allocation2 + $0x38] sm:$0xff]
        %v1306 = vld [vmem:[#allocation2 + $0x40] sm:$0xff]
        %v1307 = vld [vmem:[#allocation2 + $0x48] sm:$0xff]
        %v1308 = vld [vmem:[#allocation2 + $0x50] sm:$0xff]
        %v1309 = vld [vmem:[#allocation2 + $0x58] sm:$0xff]
        %v1310 = vld [vmem:[#allocation2 + $0x60] sm:$0xff]
        %v1311 = vld [vmem:[#allocation2 + $0x68] sm:$0xff]
        %v1312 = vld [vmem:[#allocation2 + $0x70] sm:$0xff]
        %v1313 = vld [vmem:[#allocation2 + $0x78] sm:$0xff]
        %v1314 = vld [vmem:[#allocation2 + $0x80] sm:$0xff]
        %v1315 = vld [vmem:[#allocation2 + $0x88] sm:$0xff]
        %v1316 = vld [vmem:[#allocation2 + $0x90] sm:$0xff]
        %v1317 = vld [vmem:[#allocation2 + $0x98] sm:$0xff]
        %v1318 = vld [vmem:[#allocation2 + $0xa0] sm:$0xff]
        %v1319 = vld [vmem:[#allocation2 + $0xa8] sm:$0xff]
        %v1320 = vld [vmem:[#allocation2 + $0xb0] sm:$0xff]
        %v1321 = vld [vmem:[#allocation2 + $0xb8] sm:$0xff]
        %v1322 = vld [vmem:[#allocation2 + $0xc0] sm:$0xff]
        %v1323 = vld [vmem:[#allocation2 + $0xc8] sm:$0xff]
        %v1324 = vld [vmem:[#allocation2 + $0xd0] sm:$0xff]
        %v1325 = vld [vmem:[#allocation2 + $0xd8] sm:$0xff]
        %v1326 = vld [vmem:[#allocation2 + $0xe0] sm:$0xff]
        %v1327 = vld [vmem:[#allocation2 + $0xe8] sm:$0xff]
        %v1328 = vld [vmem:[#allocation2 + $0xf0] sm:$0xff]
        %v1329 = vld [vmem:[#allocation2 + $0xf8] sm:$0xff]
        %s1330 = sld [smem:[#allocation3]]
        %v1331 = vstv %s1330
        %v1334 = vunpack.c.l.b16 %v1296
        %v1335 = vunpack.c.h.b16 %v1296
        %v1336 = vunpack.c.l.b16 %v1297
        %v1337 = vunpack.c.h.b16 %v1297
        %v1338 = vpack.c.b16 %v1336, %v1334
        %v1339 = vpack.c.b16 %v1337, %v1335
        %1342 = vmatprep.subr.bf16.mxu0 %v1299
        %1343 = vmatpush1.bf16.xpose.msra.mxu0 %v1298
        %1344 = vmatprep.subr.bf16.mxu0 %v1301
        %1345 = vmatpush1.bf16.xpose.msra.mxu0 %v1300
        %1346 = vmatprep.subr.bf16.mxu0 %v1303
        %1347 = vmatpush1.bf16.xpose.msra.mxu0 %v1302
        %1348 = vmatprep.subr.bf16.mxu0 %v1305
        %1349 = vmatpush1.bf16.xpose.msra.mxu0 %v1304
        %1350 = vmatprep.subr.bf16.mxu0 %v1307
        %1351 = vmatpush1.bf16.xpose.msra.mxu0 %v1306
        %1352 = vmatprep.subr.bf16.mxu0 %v1309
        %1353 = vmatpush1.bf16.xpose.msra.mxu0 %v1308
        %1354 = vmatprep.subr.bf16.mxu0 %v1311
        %1355 = vmatpush1.bf16.xpose.msra.mxu0 %v1310
        %1356 = vmatprep.subr.bf16.mxu0 %v1313
        %1357 = vmatpush1.bf16.xpose.msra.mxu0 %v1312
        %1358 = vmatprep.subr.bf16.mxu0 %v1315
        %1359 = vmatpush1.bf16.xpose.msra.mxu0 %v1314
        %1360 = vmatprep.subr.bf16.mxu0 %v1317
        %1361 = vmatpush1.bf16.xpose.msra.mxu0 %v1316
        %1362 = vmatprep.subr.bf16.mxu0 %v1319
        %1363 = vmatpush1.bf16.xpose.msra.mxu0 %v1318
        %1364 = vmatprep.subr.bf16.mxu0 %v1321
        %1365 = vmatpush1.bf16.xpose.msra.mxu0 %v1320
        %1366 = vmatprep.subr.bf16.mxu0 %v1323
        %1367 = vmatpush1.bf16.xpose.msra.mxu0 %v1322
        %1368 = vmatprep.subr.bf16.mxu0 %v1325
        %1369 = vmatpush1.bf16.xpose.msra.mxu0 %v1324
        %1370 = vmatprep.subr.bf16.mxu0 %v1327
        %1371 = vmatpush1.bf16.xpose.msra.mxu0 %v1326
        %1372 = vmatprep.subr.bf16.mxu0 %v1329
        %1373 = vmatpush1.bf16.xpose.msra.mxu0 %v1328
        %1374 = vmatprep.mubr.bf16.mxu0 %v1339
        %1375 = vmatmul.mubr.bf16.gmra.mrb[0].mxu0 %v1338
        %v1376 = vpop.f32.mrb[0].mxu0
        %v1377 = vadd.f32 %v1331, %v1376
        %v1378 = vpop.f32.mrb[0].mxu0
        %v1379 = vadd.f32 %v1331, %v1378
        %v1380 = vpop.f32.mrb[0].mxu0
        %v1381 = vadd.f32 %v1331, %v1380
        %v1382 = vpop.f32.mrb[0].mxu0
        %v1383 = vadd.f32 %v1331, %v1382
        %1384 = vdwg.mxu0
        %1385 = vst [vmem:[%s317] sm:$0xff] %v1377
        %1386 = vst [vmem:[%s317 + $0x8] sm:$0xff] %v1379
        %1387 = vst [vmem:[%s317 + $0x10] sm:$0xff] %v1381
        %1388 = vst [vmem:[%s317 + $0x18] sm:$0xff] %v1383
        %s1389 = sand.u32 %s203, 1
        %s1390 = sand.u32 %s203, 1
        %s1391 = smul.addr %s1390, 32
        %s1392 = scalar_lea.vmem [#allocation4], %s1391
        // Predicated region
        $region53: #{pod_deeponet_forward.1} parent=47 // pred_check
          %p1393 = pneg %p213
        $region54: #{pod_deeponet_forward.1} parent=47 // pred_check_branch
          %1395 = sbr.rel (%p1393) target = $region56
        $region55: #{pod_deeponet_forward.1} parent=47 // pred_region
          %s1396 = smul.u32 2, %s24
          %s1397 = smul.u32 2, %s23
          %s1398 = smul.addr %s1396, 4
          %s1399 = sadd.s32 %s1397, %s1398
          %s1400 = smul.addr %s1399, 8
          %s1401 = scalar_lea.vmem %s7, %s1400
          // Predicated region
          $region57: #{pod_deeponet_forward.1} parent=55 // pred_check
            _
          $region58: #{pod_deeponet_forward.1} parent=55 // pred_check_branch
            %1403 = sbr.rel (0) target = $region60
          $region59: #{pod_deeponet_forward.1} parent=55 // pred_region
            // Predicated region
            $region61: #{pod_deeponet_forward.1} parent=59 // pred_check
              _
            $region62: #{pod_deeponet_forward.1} parent=59 // pred_check_branch
              %1405 = sbr.rel (0) target = $region64
            $region63: #{pod_deeponet_forward.1} parent=59 // pred_region
              loop: start=0, step=1, limit=1
              $region65: #{pod_deeponet_forward.1} parent=63 // loop_pre_header
                _
              $region66: #{pod_deeponet_forward.1} parent=63 // loop_header
                %s1407 = sphi 0, %s1411
                %p1408 = scmp.ge.s32.totalorder %s1407, 1
                %s1412 = sphi %s1392, %s1392
                %s1413 = sphi %s1401, %s1401
              $region67: #{pod_deeponet_forward.1} parent=63 // loop_header_branch
                %1410 = sbr.rel (%p1408) target = $region71
              $region68: #{pod_deeponet_forward.1} parent=63 // loop_body
                %v1414 = vld [vmem:[%s1412] sm:$0xff]
                %1415 = vst [vmem:[%s1413] sm:$0xff] %v1414
                %v1416 = vld [vmem:[%s1412 + $0x8] sm:$0xff]
                %1417 = vst [vmem:[%s1413 + $0x8] sm:$0xff] %v1416
                %v1418 = vld [vmem:[%s1412 + $0x10] sm:$0xff]
                %1419 = vst [vmem:[%s1413 + $0x20] sm:$0xff] %v1418
                %v1420 = vld [vmem:[%s1412 + $0x18] sm:$0xff]
                %1421 = vst [vmem:[%s1413 + $0x28] sm:$0xff] %v1420
              $region69: #{pod_deeponet_forward.1} parent=63 // loop_footer
                %s1411 = sadd.s32 1, %s1407
              $region70: #{pod_deeponet_forward.1} parent=63 // loop_footer_branch
                %1406 = sbr.rel target = $region66
              $region71: #{pod_deeponet_forward.1} parent=63 // loop_exit
                _
            $region64: #{pod_deeponet_forward.1} parent=59 // pred_fallthru
              _
            // Predicated region
            $region72: #{pod_deeponet_forward.1} parent=59 // pred_check
              _
            $region73: #{pod_deeponet_forward.1} parent=59 // pred_check_branch
              %1423 = sbr.rel target = $region75
            $region74: #{pod_deeponet_forward.1} parent=59 // pred_region
              _
            $region75: #{pod_deeponet_forward.1} parent=59 // pred_fallthru
              _
          $region60: #{pod_deeponet_forward.1} parent=55 // pred_fallthru
            _
          %1424 = vnop
        $region56: #{pod_deeponet_forward.1} parent=47 // pred_fallthru
          _
      $region48: #{pod_deeponet_forward.1} parent=5 // pred_fallthru
        _
      %p1425 = scmp.le.s32.totalorder 2, %s14
      // Predicated region
      $region76: #{pod_deeponet_forward.1} parent=5 // pred_check
        %p1426 = pneg %p1425
      $region77: #{pod_deeponet_forward.1} parent=5 // pred_check_branch
        %1428 = sbr.rel (%p1426) target = $region79
      $region78: #{pod_deeponet_forward.1} parent=5 // pred_region
        %s1429 = ssub.s32 %s14, 2
        // Predicated region
        $region80: #{pod_deeponet_forward.1} parent=78 // pred_check
          %p1430 = pneg %p219
        $region81: #{pod_deeponet_forward.1} parent=78 // pred_check_branch
          %1432 = sbr.rel (%p1430) target = $region83
        $region82: #{pod_deeponet_forward.1} parent=78 // pred_region
          %s1433 = sand.u32 %s204, 1
          %s1434 = sand.u32 %s204, 1
          %s1435 = smul.addr %s1434, 32
          %s1436 = scalar_lea.vmem [#allocation4], %s1435
        $region83: #{pod_deeponet_forward.1} parent=78 // pred_fallthru
          _
      $region79: #{pod_deeponet_forward.1} parent=5 // pred_fallthru
        _
    $region6: #{pod_deeponet_forward.1} parent=1 // loop_footer
      %s18 = sadd.s32 1, %s14
    $region7: #{pod_deeponet_forward.1} parent=1 // loop_footer_branch
      %13 = sbr.rel target = $region3
    $region8: #{pod_deeponet_forward.1} parent=1 // loop_exit
      _

</llo_original>
